<compile_context>
chip_gen: v6e
topology: v6e:2x2x1
jax: 0.10.0
libtpu: 0.0.40
codegen_flags: <defaults>
</compile_context>

<pallas_src>
import math
import functools

import jax
import jax.numpy as jnp
from jax.experimental import pallas as pl
from jax.experimental.pallas import tpu as pltpu

# ---- fixed model hyper-parameters (deterministic, in-script) -----------------
INPUT_SIZE = 32
HIDDEN_SIZE = 32
SEQ_LEN = 8
BATCH = 2
FEEDBACK_DELAY = 4
TAU_TRACE = 20.0
DECAY_TRACE = math.exp(-1.0 / TAU_TRACE)   # self.decay_trace
ALPHA = 0.9                                # leaky-integrator membrane decay
LR = 0.1                                   # Hebbian learning rate
MEM_SCALE = 0.2                            # the 0.2 factor on the mem readout


# ---- Pallas kernel: one block of `bb` batch rows per grid step ----------------
def memory_layer_kernel(x_ref, wt_ref, mem_ref,
                        mem_out_ref, key_seq_ref, val_seq_ref,
                        states_ref, val_buf_ref):
    bb, T, D = x_ref.shape
    H = mem_ref.shape[-1]
    FB = val_buf_ref.shape[-1] // H

    # -- batched input projection: a single (bb*T, D) x (D, 2H) MXU matmul ------
    # (reshape only relabels leading dims; layout is unchanged)
    x2d = x_ref[...].reshape(bb * T, D)
    i_all = jnp.dot(x2d, wt_ref[...], preferred_element_type=jnp.float32)
    i_all = i_all.reshape(bb, T, 2 * H)
    ik = i_all[:, :, :H]           # (bb, T, H) key drive
    iv = i_all[:, :, H:]           # (bb, T, H) value drive

    mem = mem_ref[...]             # (bb, H, H)
    zeros = jnp.zeros((bb, H), jnp.float32)
    ks, vs, kt, vt = zeros, zeros, zeros, zeros

    keys, vals = [], []
    # Fully unrolled time loop (T is known at trace time): every slice below is
    # static, so the serial recurrence is completely visible to the scheduler.
    for t in range(T):
        # key neuron dynamics
        ks = ALPHA * ks + ik[:, t, :]
        key = jnp.tanh(ks)                                    # (bb, H)

        # memory readout, no transpose of mem: contract over the lane axis j,
        # exactly mirroring torch's 0.2 * (key.unsqueeze(1) * mem).sum(2)
        ikv = MEM_SCALE * jnp.sum(mem * key[:, None, :], axis=-1)   # (bb, H)

        # value neuron dynamics
        vs = ALPHA * vs + iv[:, t, :] + ikv
        val = jnp.tanh(vs)                                    # (bb, H)

        # exponential traces
        kt = DECAY_TRACE * kt + (1.0 - DECAY_TRACE) * key
        vt = DECAY_TRACE * vt + (1.0 - DECAY_TRACE) * val

        # Hebbian plasticity: dM[b, i, j] = LR * val_trace[b, i] * key_trace[b, j]
        mem = mem + LR * (vt[:, :, None] * kt[:, None, :])

        keys.append(key)
        vals.append(val)

    # -- lane-dense epilogue stores (no per-step masked 32-lane stores) ---------
    mem_out_ref[...] = mem
    key_seq_ref[:, 0, :] = jnp.concatenate(keys, axis=-1)                 # (bb, T*H)
    val_seq_ref[:, 0, :] = jnp.concatenate(vals, axis=-1)                 # (bb, T*H)
    states_ref[:, 0, :] = jnp.concatenate([ks, vs, kt, vt], axis=-1)      # (bb, 4*H)

    # feedback buffer: only the LAST write to each slot survives; slots never
    # written this call stay zero (same as torch's zero-initialized buffer).
    slots = []
    for s in range(FB):
        ts = [t for t in range(T) if t % FB == s]
        slots.append(vals[ts[-1]] if ts else jnp.zeros((bb, H), jnp.float32))
    val_buf_ref[:, 0, :] = jnp.concatenate(slots, axis=-1)                # (bb, FB*H)


# ---- wrapper ------------------------------------------------------------------
@functools.partial(jax.jit, static_argnames=("batch_block",))
def memory_layer_forward(x, W, mem, *, batch_block=None):
    """batch_block=None folds the whole batch into one grid step (v5e/v6e);
    batch_block=1 gives grid=(B,) 'parallel' so v7x's two TensorCores split B."""
    B, T, D_in = x.shape
    H = mem.shape[-1]
    bb = B if batch_block is None else batch_block
    assert B % bb == 0
    grid = (B // bb,)

    # pre-transpose W outside the kernel: kernel contracts x @ W_T directly.
    W_T = W.T                                   # (D_in, 2H)

    out_shapes = (
        jax.ShapeDtypeStruct((B, H, H), jnp.float32),                   # mem
        jax.ShapeDtypeStruct((B, 1, T * H), jnp.float32),               # key seq (flat)
        jax.ShapeDtypeStruct((B, 1, T * H), jnp.float32),               # val seq (flat)
        jax.ShapeDtypeStruct((B, 1, 4 * H), jnp.float32),               # [ks|vs|kt|vt]
        jax.ShapeDtypeStruct((B, 1, FEEDBACK_DELAY * H), jnp.float32),  # val buffer (flat)
    )
    bmap = lambda b: (b, 0, 0)
    out_specs = (
        pl.BlockSpec((bb, H, H), bmap),
        pl.BlockSpec((bb, 1, T * H), bmap),
        pl.BlockSpec((bb, 1, T * H), bmap),
        pl.BlockSpec((bb, 1, 4 * H), bmap),
        pl.BlockSpec((bb, 1, FEEDBACK_DELAY * H), bmap),
    )
    in_specs = [
        pl.BlockSpec((bb, T, D_in), bmap),               # x, bb batch rows
        pl.BlockSpec((D_in, 2 * H), lambda b: (0, 0)),   # W_T, shared
        pl.BlockSpec((bb, H, H), bmap),                  # mem, bb batch rows
    ]

    outs = pl.pallas_call(
        memory_layer_kernel,
        out_shape=out_shapes,
        grid_spec=pltpu.PrefetchScalarGridSpec(
            num_scalar_prefetch=0,
            grid=grid,
            in_specs=in_specs,
            out_specs=out_specs,
        ),
        compiler_params=pltpu.CompilerParams(
            dimension_semantics=("parallel",)),
    )(x, W_T, mem)

    mem_out, key_flat, val_flat, states_flat, buf_flat = outs
    key_seq = key_flat[:, 0, :].reshape(B, T, H)
    val_seq = val_flat[:, 0, :].reshape(B, T, H)
    st = states_flat[:, 0, :]
    key_state = st[:, 0 * H:1 * H]
    val_state = st[:, 1 * H:2 * H]
    key_trace = st[:, 2 * H:3 * H]
    val_trace = st[:, 3 * H:4 * H]
    val_buf = buf_flat[:, 0, :].reshape(B, FEEDBACK_DELAY, H)

    states = [key_state, val_state, key_trace, val_trace, val_buf]
    return mem_out, key_seq, val_seq, states


# ---- pure-JAX reference (mirrors the torch forward semantics) ------------------
def memory_layer_reference(x, W, mem):
    B, T, _ = x.shape
    H = mem.shape[-1]
    i_all = jnp.einsum('btd,hd->bth', x, W)
    ik, iv = i_all[..., :H], i_all[..., H:]
    ks = jnp.zeros((B, H)); vs = jnp.zeros((B, H))
    kt = jnp.zeros((B, H)); vt = jnp.zeros((B, H))
    val_buf = jnp.zeros((B, FEEDBACK_DELAY, H))
    keys, vals = [], []
    for t in range(T):
        ks = ALPHA * ks + ik[:, t]
        key = jnp.tanh(ks)
        ikv = MEM_SCALE * (key[:, None, :] * mem).sum(-1)
        vs = ALPHA * vs + iv[:, t] + ikv
        val = jnp.tanh(vs)
        kt = DECAY_TRACE * kt + (1.0 - DECAY_TRACE) * key
        vt = DECAY_TRACE * vt + (1.0 - DECAY_TRACE) * val
        val_buf = val_buf.at[:, t % FEEDBACK_DELAY, :].set(val)
        mem = mem + LR * vt[:, :, None] * kt[:, None, :]
        keys.append(key); vals.append(val)
    return (mem, jnp.stack(keys, 1), jnp.stack(vals, 1),
            [ks, vs, kt, vt, val_buf])


def _check(got, ref):
    mem, key_seq, val_seq, states = got
    mem_r, key_r, val_r, states_r = ref
    assert jnp.allclose(mem, mem_r, atol=1e-5), "mem mismatch"
    assert jnp.allclose(key_seq, key_r, atol=1e-5), "key sequence mismatch"
    assert jnp.allclose(val_seq, val_r, atol=1e-5), "val sequence mismatch"
    for a, b in zip(states, states_r):
        assert jnp.allclose(a, b, atol=1e-5), "state mismatch"


if __name__ == "__main__":
    key = jax.random.PRNGKey(0)
    kx, kw = jax.random.split(key)

    # Xavier-uniform init of W (gain = sqrt(2)), shape (2*hidden, input)
    fan_in, fan_out = INPUT_SIZE, 2 * HIDDEN_SIZE
    bound = math.sqrt(2.0) * math.sqrt(6.0 / (fan_in + fan_out))
    W = jax.random.uniform(kw, (2 * HIDDEN_SIZE, INPUT_SIZE),
                           jnp.float32, -bound, bound)

    x = jax.random.normal(kx, (BATCH, SEQ_LEN, INPUT_SIZE), jnp.float32)
    mem0 = jnp.zeros((BATCH, HIDDEN_SIZE, HIDDEN_SIZE), jnp.float32)

    ref = memory_layer_reference(x, W, mem0)

    # default path: batch folded into one grid step (single-TC v5e / v6e)
    out = memory_layer_forward(x, W, mem0)
    jax.block_until_ready(out)
    _check(out, ref)

    # v7x-style path: one batch element per grid step ("parallel" over cores)
    out2 = memory_layer_forward(x, W, mem0, batch_block=1)
    jax.block_until_ready(out2)
    _check(out2, ref)

    print("KERNEL_OK")
</pallas_src>

<mosaic_0001>
module attributes {stable_mosaic.version = 11 : i64} {
  func.func @memory_layer_kernel(%arg0: i32, %arg1: memref<2x8x32xf32, #tpu.memory_space<vmem>>, %arg2: memref<32x64xf32, #tpu.memory_space<vmem>>, %arg3: memref<2x32x32xf32, #tpu.memory_space<vmem>>, %arg4: memref<2x32x32xf32, #tpu.memory_space<vmem>>, %arg5: memref<2x1x256xf32, #tpu.memory_space<vmem>>, %arg6: memref<2x1x256xf32, #tpu.memory_space<vmem>>, %arg7: memref<2x1x128xf32, #tpu.memory_space<vmem>>, %arg8: memref<2x1x128xf32, #tpu.memory_space<vmem>>) attributes {dimension_semantics = [#tpu.dimension_semantics<parallel>], iteration_bounds = array<i64: 1>, scalar_prefetch = 0 : i64, scratch_operands = 0 : i64, tpu.core_type = #tpu.core_type<tc>, window_params = [{transform_indices = @transform_0, window_bounds = array<i64: 2, 8, 32>}, {pipeline_mode = #tpu.pipeline_mode<synchronous>, transform_indices = @transform_1, window_bounds = array<i64: 32, 64>}, {transform_indices = @transform_2, window_bounds = array<i64: 2, 32, 32>}, {transform_indices = @transform_3, window_bounds = array<i64: 2, 32, 32>}, {transform_indices = @transform_4, window_bounds = array<i64: 2, 1, 256>}, {transform_indices = @transform_5, window_bounds = array<i64: 2, 1, 256>}, {transform_indices = @transform_6, window_bounds = array<i64: 2, 1, 128>}, {transform_indices = @transform_7, window_bounds = array<i64: 2, 1, 128>}]} {
    %c0 = arith.constant 0 : index
    %c0_0 = arith.constant 0 : index
    %c0_1 = arith.constant 0 : index
    %0 = vector.load %arg1[%c0, %c0_0, %c0_1] : memref<2x8x32xf32, #tpu.memory_space<vmem>>, vector<2x8x32xf32>
    %1 = vector.shape_cast %0 : vector<2x8x32xf32> to vector<16x32xf32>
    %c0_2 = arith.constant 0 : index
    %c0_3 = arith.constant 0 : index
    %2 = vector.load %arg2[%c0_2, %c0_3] : memref<32x64xf32, #tpu.memory_space<vmem>>, vector<32x64xf32>
    %cst = arith.constant dense<0.000000e+00> : vector<16x64xf32>
    %3 = tpu.matmul %1, %2, %cst {dimension_numbers = #tpu.dot_dimension_numbers<[1], [0], [0], [1], [0, 0, 1, 1], [], []>} : vector<16x32xf32>, vector<32x64xf32>, vector<16x64xf32> -> vector<16x64xf32>
    %4 = vector.shape_cast %3 : vector<16x64xf32> to vector<2x8x64xf32>
    %5 = vector.extract_strided_slice %4 {offsets = [0, 0, 0], sizes = [2, 8, 32], strides = [1, 1, 1]} : vector<2x8x64xf32> to vector<2x8x32xf32>
    %6 = vector.extract_strided_slice %4 {offsets = [0, 0, 32], sizes = [2, 8, 32], strides = [1, 1, 1]} : vector<2x8x64xf32> to vector<2x8x32xf32>
    %c0_4 = arith.constant 0 : index
    %c0_5 = arith.constant 0 : index
    %c0_6 = arith.constant 0 : index
    %7 = vector.load %arg3[%c0_4, %c0_5, %c0_6] : memref<2x32x32xf32, #tpu.memory_space<vmem>>, vector<2x32x32xf32>
    %cst_7 = arith.constant 0.000000e+00 : f32
    %8 = vector.broadcast %cst_7 : f32 to vector<2x32xf32>
    %cst_8 = arith.constant 0.899999976 : f32
    %9 = vector.broadcast %cst_8 : f32 to vector<2x32xf32>
    %10 = arith.mulf %9, %8 : vector<2x32xf32>
    %11 = vector.extract_strided_slice %5 {offsets = [0, 0, 0], sizes = [2, 1, 32], strides = [1, 1, 1]} : vector<2x8x32xf32> to vector<2x1x32xf32>
    %12 = vector.shape_cast %11 : vector<2x1x32xf32> to vector<2x32xf32>
    %13 = arith.addf %10, %12 : vector<2x32xf32>
    %14 = math.tanh %13 : vector<2x32xf32>
    %15 = vector.shape_cast %14 : vector<2x32xf32> to vector<2x1x32xf32>
    %16 = vector.broadcast %15 : vector<2x1x32xf32> to vector<2x32x32xf32>
    %17 = arith.mulf %7, %16 : vector<2x32x32xf32>
    %cst_9 = arith.constant dense<0.000000e+00> : vector<2x32xf32>
    %18 = vector.multi_reduction <add>, %17, %cst_9 [2] : vector<2x32x32xf32> to vector<2x32xf32>
    %cst_10 = arith.constant 2.000000e-01 : f32
    %19 = vector.broadcast %cst_10 : f32 to vector<2x32xf32>
    %20 = arith.mulf %19, %18 : vector<2x32xf32>
    %cst_11 = arith.constant 0.899999976 : f32
    %21 = vector.broadcast %cst_11 : f32 to vector<2x32xf32>
    %22 = arith.mulf %21, %8 : vector<2x32xf32>
    %23 = vector.extract_strided_slice %6 {offsets = [0, 0, 0], sizes = [2, 1, 32], strides = [1, 1, 1]} : vector<2x8x32xf32> to vector<2x1x32xf32>
    %24 = vector.shape_cast %23 : vector<2x1x32xf32> to vector<2x32xf32>
    %25 = arith.addf %22, %24 : vector<2x32xf32>
    %26 = arith.addf %25, %20 : vector<2x32xf32>
    %27 = math.tanh %26 : vector<2x32xf32>
    %cst_12 = arith.constant 0.951229453 : f32
    %28 = vector.broadcast %cst_12 : f32 to vector<2x32xf32>
    %29 = arith.mulf %28, %8 : vector<2x32xf32>
    %cst_13 = arith.constant 0.0487705767 : f32
    %30 = vector.broadcast %cst_13 : f32 to vector<2x32xf32>
    %31 = arith.mulf %30, %14 : vector<2x32xf32>
    %32 = arith.addf %29, %31 : vector<2x32xf32>
    %cst_14 = arith.constant 0.951229453 : f32
    %33 = vector.broadcast %cst_14 : f32 to vector<2x32xf32>
    %34 = arith.mulf %33, %8 : vector<2x32xf32>
    %cst_15 = arith.constant 0.0487705767 : f32
    %35 = vector.broadcast %cst_15 : f32 to vector<2x32xf32>
    %36 = arith.mulf %35, %27 : vector<2x32xf32>
    %37 = arith.addf %34, %36 : vector<2x32xf32>
    %38 = vector.shape_cast %37 : vector<2x32xf32> to vector<2x32x1xf32>
    %39 = vector.shape_cast %32 : vector<2x32xf32> to vector<2x1x32xf32>
    %40 = vector.broadcast %38 : vector<2x32x1xf32> to vector<2x32x32xf32>
    %41 = vector.broadcast %39 : vector<2x1x32xf32> to vector<2x32x32xf32>
    %42 = arith.mulf %40, %41 : vector<2x32x32xf32>
    %cst_16 = arith.constant 1.000000e-01 : f32
    %43 = vector.broadcast %cst_16 : f32 to vector<2x32x32xf32>
    %44 = arith.mulf %43, %42 : vector<2x32x32xf32>
    %45 = arith.addf %7, %44 : vector<2x32x32xf32>
    %cst_17 = arith.constant 0.899999976 : f32
    %46 = vector.broadcast %cst_17 : f32 to vector<2x32xf32>
    %47 = arith.mulf %46, %13 : vector<2x32xf32>
    %48 = vector.extract_strided_slice %5 {offsets = [0, 1, 0], sizes = [2, 1, 32], strides = [1, 1, 1]} : vector<2x8x32xf32> to vector<2x1x32xf32>
    %49 = vector.shape_cast %48 : vector<2x1x32xf32> to vector<2x32xf32>
    %50 = arith.addf %47, %49 : vector<2x32xf32>
    %51 = math.tanh %50 : vector<2x32xf32>
    %52 = vector.shape_cast %51 : vector<2x32xf32> to vector<2x1x32xf32>
    %53 = vector.broadcast %52 : vector<2x1x32xf32> to vector<2x32x32xf32>
    %54 = arith.mulf %45, %53 : vector<2x32x32xf32>
    %cst_18 = arith.constant dense<0.000000e+00> : vector<2x32xf32>
    %55 = vector.multi_reduction <add>, %54, %cst_18 [2] : vector<2x32x32xf32> to vector<2x32xf32>
    %cst_19 = arith.constant 2.000000e-01 : f32
    %56 = vector.broadcast %cst_19 : f32 to vector<2x32xf32>
    %57 = arith.mulf %56, %55 : vector<2x32xf32>
    %cst_20 = arith.constant 0.899999976 : f32
    %58 = vector.broadcast %cst_20 : f32 to vector<2x32xf32>
    %59 = arith.mulf %58, %26 : vector<2x32xf32>
    %60 = vector.extract_strided_slice %6 {offsets = [0, 1, 0], sizes = [2, 1, 32], strides = [1, 1, 1]} : vector<2x8x32xf32> to vector<2x1x32xf32>
    %61 = vector.shape_cast %60 : vector<2x1x32xf32> to vector<2x32xf32>
    %62 = arith.addf %59, %61 : vector<2x32xf32>
    %63 = arith.addf %62, %57 : vector<2x32xf32>
    %64 = math.tanh %63 : vector<2x32xf32>
    %cst_21 = arith.constant 0.951229453 : f32
    %65 = vector.broadcast %cst_21 : f32 to vector<2x32xf32>
    %66 = arith.mulf %65, %32 : vector<2x32xf32>
    %cst_22 = arith.constant 0.0487705767 : f32
    %67 = vector.broadcast %cst_22 : f32 to vector<2x32xf32>
    %68 = arith.mulf %67, %51 : vector<2x32xf32>
    %69 = arith.addf %66, %68 : vector<2x32xf32>
    %cst_23 = arith.constant 0.951229453 : f32
    %70 = vector.broadcast %cst_23 : f32 to vector<2x32xf32>
    %71 = arith.mulf %70, %37 : vector<2x32xf32>
    %cst_24 = arith.constant 0.0487705767 : f32
    %72 = vector.broadcast %cst_24 : f32 to vector<2x32xf32>
    %73 = arith.mulf %72, %64 : vector<2x32xf32>
    %74 = arith.addf %71, %73 : vector<2x32xf32>
    %75 = vector.shape_cast %74 : vector<2x32xf32> to vector<2x32x1xf32>
    %76 = vector.shape_cast %69 : vector<2x32xf32> to vector<2x1x32xf32>
    %77 = vector.broadcast %75 : vector<2x32x1xf32> to vector<2x32x32xf32>
    %78 = vector.broadcast %76 : vector<2x1x32xf32> to vector<2x32x32xf32>
    %79 = arith.mulf %77, %78 : vector<2x32x32xf32>
    %cst_25 = arith.constant 1.000000e-01 : f32
    %80 = vector.broadcast %cst_25 : f32 to vector<2x32x32xf32>
    %81 = arith.mulf %80, %79 : vector<2x32x32xf32>
    %82 = arith.addf %45, %81 : vector<2x32x32xf32>
    %cst_26 = arith.constant 0.899999976 : f32
    %83 = vector.broadcast %cst_26 : f32 to vector<2x32xf32>
    %84 = arith.mulf %83, %50 : vector<2x32xf32>
    %85 = vector.extract_strided_slice %5 {offsets = [0, 2, 0], sizes = [2, 1, 32], strides = [1, 1, 1]} : vector<2x8x32xf32> to vector<2x1x32xf32>
    %86 = vector.shape_cast %85 : vector<2x1x32xf32> to vector<2x32xf32>
    %87 = arith.addf %84, %86 : vector<2x32xf32>
    %88 = math.tanh %87 : vector<2x32xf32>
    %89 = vector.shape_cast %88 : vector<2x32xf32> to vector<2x1x32xf32>
    %90 = vector.broadcast %89 : vector<2x1x32xf32> to vector<2x32x32xf32>
    %91 = arith.mulf %82, %90 : vector<2x32x32xf32>
    %cst_27 = arith.constant dense<0.000000e+00> : vector<2x32xf32>
    %92 = vector.multi_reduction <add>, %91, %cst_27 [2] : vector<2x32x32xf32> to vector<2x32xf32>
    %cst_28 = arith.constant 2.000000e-01 : f32
    %93 = vector.broadcast %cst_28 : f32 to vector<2x32xf32>
    %94 = arith.mulf %93, %92 : vector<2x32xf32>
    %cst_29 = arith.constant 0.899999976 : f32
    %95 = vector.broadcast %cst_29 : f32 to vector<2x32xf32>
    %96 = arith.mulf %95, %63 : vector<2x32xf32>
    %97 = vector.extract_strided_slice %6 {offsets = [0, 2, 0], sizes = [2, 1, 32], strides = [1, 1, 1]} : vector<2x8x32xf32> to vector<2x1x32xf32>
    %98 = vector.shape_cast %97 : vector<2x1x32xf32> to vector<2x32xf32>
    %99 = arith.addf %96, %98 : vector<2x32xf32>
    %100 = arith.addf %99, %94 : vector<2x32xf32>
    %101 = math.tanh %100 : vector<2x32xf32>
    %cst_30 = arith.constant 0.951229453 : f32
    %102 = vector.broadcast %cst_30 : f32 to vector<2x32xf32>
    %103 = arith.mulf %102, %69 : vector<2x32xf32>
    %cst_31 = arith.constant 0.0487705767 : f32
    %104 = vector.broadcast %cst_31 : f32 to vector<2x32xf32>
    %105 = arith.mulf %104, %88 : vector<2x32xf32>
    %106 = arith.addf %103, %105 : vector<2x32xf32>
    %cst_32 = arith.constant 0.951229453 : f32
    %107 = vector.broadcast %cst_32 : f32 to vector<2x32xf32>
    %108 = arith.mulf %107, %74 : vector<2x32xf32>
    %cst_33 = arith.constant 0.0487705767 : f32
    %109 = vector.broadcast %cst_33 : f32 to vector<2x32xf32>
    %110 = arith.mulf %109, %101 : vector<2x32xf32>
    %111 = arith.addf %108, %110 : vector<2x32xf32>
    %112 = vector.shape_cast %111 : vector<2x32xf32> to vector<2x32x1xf32>
    %113 = vector.shape_cast %106 : vector<2x32xf32> to vector<2x1x32xf32>
    %114 = vector.broadcast %112 : vector<2x32x1xf32> to vector<2x32x32xf32>
    %115 = vector.broadcast %113 : vector<2x1x32xf32> to vector<2x32x32xf32>
    %116 = arith.mulf %114, %115 : vector<2x32x32xf32>
    %cst_34 = arith.constant 1.000000e-01 : f32
    %117 = vector.broadcast %cst_34 : f32 to vector<2x32x32xf32>
    %118 = arith.mulf %117, %116 : vector<2x32x32xf32>
    %119 = arith.addf %82, %118 : vector<2x32x32xf32>
    %cst_35 = arith.constant 0.899999976 : f32
    %120 = vector.broadcast %cst_35 : f32 to vector<2x32xf32>
    %121 = arith.mulf %120, %87 : vector<2x32xf32>
    %122 = vector.extract_strided_slice %5 {offsets = [0, 3, 0], sizes = [2, 1, 32], strides = [1, 1, 1]} : vector<2x8x32xf32> to vector<2x1x32xf32>
    %123 = vector.shape_cast %122 : vector<2x1x32xf32> to vector<2x32xf32>
    %124 = arith.addf %121, %123 : vector<2x32xf32>
    %125 = math.tanh %124 : vector<2x32xf32>
    %126 = vector.shape_cast %125 : vector<2x32xf32> to vector<2x1x32xf32>
    %127 = vector.broadcast %126 : vector<2x1x32xf32> to vector<2x32x32xf32>
    %128 = arith.mulf %119, %127 : vector<2x32x32xf32>
    %cst_36 = arith.constant dense<0.000000e+00> : vector<2x32xf32>
    %129 = vector.multi_reduction <add>, %128, %cst_36 [2] : vector<2x32x32xf32> to vector<2x32xf32>
    %cst_37 = arith.constant 2.000000e-01 : f32
    %130 = vector.broadcast %cst_37 : f32 to vector<2x32xf32>
    %131 = arith.mulf %130, %129 : vector<2x32xf32>
    %cst_38 = arith.constant 0.899999976 : f32
    %132 = vector.broadcast %cst_38 : f32 to vector<2x32xf32>
    %133 = arith.mulf %132, %100 : vector<2x32xf32>
    %134 = vector.extract_strided_slice %6 {offsets = [0, 3, 0], sizes = [2, 1, 32], strides = [1, 1, 1]} : vector<2x8x32xf32> to vector<2x1x32xf32>
    %135 = vector.shape_cast %134 : vector<2x1x32xf32> to vector<2x32xf32>
    %136 = arith.addf %133, %135 : vector<2x32xf32>
    %137 = arith.addf %136, %131 : vector<2x32xf32>
    %138 = math.tanh %137 : vector<2x32xf32>
    %cst_39 = arith.constant 0.951229453 : f32
    %139 = vector.broadcast %cst_39 : f32 to vector<2x32xf32>
    %140 = arith.mulf %139, %106 : vector<2x32xf32>
    %cst_40 = arith.constant 0.0487705767 : f32
    %141 = vector.broadcast %cst_40 : f32 to vector<2x32xf32>
    %142 = arith.mulf %141, %125 : vector<2x32xf32>
    %143 = arith.addf %140, %142 : vector<2x32xf32>
    %cst_41 = arith.constant 0.951229453 : f32
    %144 = vector.broadcast %cst_41 : f32 to vector<2x32xf32>
    %145 = arith.mulf %144, %111 : vector<2x32xf32>
    %cst_42 = arith.constant 0.0487705767 : f32
    %146 = vector.broadcast %cst_42 : f32 to vector<2x32xf32>
    %147 = arith.mulf %146, %138 : vector<2x32xf32>
    %148 = arith.addf %145, %147 : vector<2x32xf32>
    %149 = vector.shape_cast %148 : vector<2x32xf32> to vector<2x32x1xf32>
    %150 = vector.shape_cast %143 : vector<2x32xf32> to vector<2x1x32xf32>
    %151 = vector.broadcast %149 : vector<2x32x1xf32> to vector<2x32x32xf32>
    %152 = vector.broadcast %150 : vector<2x1x32xf32> to vector<2x32x32xf32>
    %153 = arith.mulf %151, %152 : vector<2x32x32xf32>
    %cst_43 = arith.constant 1.000000e-01 : f32
    %154 = vector.broadcast %cst_43 : f32 to vector<2x32x32xf32>
    %155 = arith.mulf %154, %153 : vector<2x32x32xf32>
    %156 = arith.addf %119, %155 : vector<2x32x32xf32>
    %cst_44 = arith.constant 0.899999976 : f32
    %157 = vector.broadcast %cst_44 : f32 to vector<2x32xf32>
    %158 = arith.mulf %157, %124 : vector<2x32xf32>
    %159 = vector.extract_strided_slice %5 {offsets = [0, 4, 0], sizes = [2, 1, 32], strides = [1, 1, 1]} : vector<2x8x32xf32> to vector<2x1x32xf32>
    %160 = vector.shape_cast %159 : vector<2x1x32xf32> to vector<2x32xf32>
    %161 = arith.addf %158, %160 : vector<2x32xf32>
    %162 = math.tanh %161 : vector<2x32xf32>
    %163 = vector.shape_cast %162 : vector<2x32xf32> to vector<2x1x32xf32>
    %164 = vector.broadcast %163 : vector<2x1x32xf32> to vector<2x32x32xf32>
    %165 = arith.mulf %156, %164 : vector<2x32x32xf32>
    %cst_45 = arith.constant dense<0.000000e+00> : vector<2x32xf32>
    %166 = vector.multi_reduction <add>, %165, %cst_45 [2] : vector<2x32x32xf32> to vector<2x32xf32>
    %cst_46 = arith.constant 2.000000e-01 : f32
    %167 = vector.broadcast %cst_46 : f32 to vector<2x32xf32>
    %168 = arith.mulf %167, %166 : vector<2x32xf32>
    %cst_47 = arith.constant 0.899999976 : f32
    %169 = vector.broadcast %cst_47 : f32 to vector<2x32xf32>
    %170 = arith.mulf %169, %137 : vector<2x32xf32>
    %171 = vector.extract_strided_slice %6 {offsets = [0, 4, 0], sizes = [2, 1, 32], strides = [1, 1, 1]} : vector<2x8x32xf32> to vector<2x1x32xf32>
    %172 = vector.shape_cast %171 : vector<2x1x32xf32> to vector<2x32xf32>
    %173 = arith.addf %170, %172 : vector<2x32xf32>
    %174 = arith.addf %173, %168 : vector<2x32xf32>
    %175 = math.tanh %174 : vector<2x32xf32>
    %cst_48 = arith.constant 0.951229453 : f32
    %176 = vector.broadcast %cst_48 : f32 to vector<2x32xf32>
    %177 = arith.mulf %176, %143 : vector<2x32xf32>
    %cst_49 = arith.constant 0.0487705767 : f32
    %178 = vector.broadcast %cst_49 : f32 to vector<2x32xf32>
    %179 = arith.mulf %178, %162 : vector<2x32xf32>
    %180 = arith.addf %177, %179 : vector<2x32xf32>
    %cst_50 = arith.constant 0.951229453 : f32
    %181 = vector.broadcast %cst_50 : f32 to vector<2x32xf32>
    %182 = arith.mulf %181, %148 : vector<2x32xf32>
    %cst_51 = arith.constant 0.0487705767 : f32
    %183 = vector.broadcast %cst_51 : f32 to vector<2x32xf32>
    %184 = arith.mulf %183, %175 : vector<2x32xf32>
    %185 = arith.addf %182, %184 : vector<2x32xf32>
    %186 = vector.shape_cast %185 : vector<2x32xf32> to vector<2x32x1xf32>
    %187 = vector.shape_cast %180 : vector<2x32xf32> to vector<2x1x32xf32>
    %188 = vector.broadcast %186 : vector<2x32x1xf32> to vector<2x32x32xf32>
    %189 = vector.broadcast %187 : vector<2x1x32xf32> to vector<2x32x32xf32>
    %190 = arith.mulf %188, %189 : vector<2x32x32xf32>
    %cst_52 = arith.constant 1.000000e-01 : f32
    %191 = vector.broadcast %cst_52 : f32 to vector<2x32x32xf32>
    %192 = arith.mulf %191, %190 : vector<2x32x32xf32>
    %193 = arith.addf %156, %192 : vector<2x32x32xf32>
    %cst_53 = arith.constant 0.899999976 : f32
    %194 = vector.broadcast %cst_53 : f32 to vector<2x32xf32>
    %195 = arith.mulf %194, %161 : vector<2x32xf32>
    %196 = vector.extract_strided_slice %5 {offsets = [0, 5, 0], sizes = [2, 1, 32], strides = [1, 1, 1]} : vector<2x8x32xf32> to vector<2x1x32xf32>
    %197 = vector.shape_cast %196 : vector<2x1x32xf32> to vector<2x32xf32>
    %198 = arith.addf %195, %197 : vector<2x32xf32>
    %199 = math.tanh %198 : vector<2x32xf32>
    %200 = vector.shape_cast %199 : vector<2x32xf32> to vector<2x1x32xf32>
    %201 = vector.broadcast %200 : vector<2x1x32xf32> to vector<2x32x32xf32>
    %202 = arith.mulf %193, %201 : vector<2x32x32xf32>
    %cst_54 = arith.constant dense<0.000000e+00> : vector<2x32xf32>
    %203 = vector.multi_reduction <add>, %202, %cst_54 [2] : vector<2x32x32xf32> to vector<2x32xf32>
    %cst_55 = arith.constant 2.000000e-01 : f32
    %204 = vector.broadcast %cst_55 : f32 to vector<2x32xf32>
    %205 = arith.mulf %204, %203 : vector<2x32xf32>
    %cst_56 = arith.constant 0.899999976 : f32
    %206 = vector.broadcast %cst_56 : f32 to vector<2x32xf32>
    %207 = arith.mulf %206, %174 : vector<2x32xf32>
    %208 = vector.extract_strided_slice %6 {offsets = [0, 5, 0], sizes = [2, 1, 32], strides = [1, 1, 1]} : vector<2x8x32xf32> to vector<2x1x32xf32>
    %209 = vector.shape_cast %208 : vector<2x1x32xf32> to vector<2x32xf32>
    %210 = arith.addf %207, %209 : vector<2x32xf32>
    %211 = arith.addf %210, %205 : vector<2x32xf32>
    %212 = math.tanh %211 : vector<2x32xf32>
    %cst_57 = arith.constant 0.951229453 : f32
    %213 = vector.broadcast %cst_57 : f32 to vector<2x32xf32>
    %214 = arith.mulf %213, %180 : vector<2x32xf32>
    %cst_58 = arith.constant 0.0487705767 : f32
    %215 = vector.broadcast %cst_58 : f32 to vector<2x32xf32>
    %216 = arith.mulf %215, %199 : vector<2x32xf32>
    %217 = arith.addf %214, %216 : vector<2x32xf32>
    %cst_59 = arith.constant 0.951229453 : f32
    %218 = vector.broadcast %cst_59 : f32 to vector<2x32xf32>
    %219 = arith.mulf %218, %185 : vector<2x32xf32>
    %cst_60 = arith.constant 0.0487705767 : f32
    %220 = vector.broadcast %cst_60 : f32 to vector<2x32xf32>
    %221 = arith.mulf %220, %212 : vector<2x32xf32>
    %222 = arith.addf %219, %221 : vector<2x32xf32>
    %223 = vector.shape_cast %222 : vector<2x32xf32> to vector<2x32x1xf32>
    %224 = vector.shape_cast %217 : vector<2x32xf32> to vector<2x1x32xf32>
    %225 = vector.broadcast %223 : vector<2x32x1xf32> to vector<2x32x32xf32>
    %226 = vector.broadcast %224 : vector<2x1x32xf32> to vector<2x32x32xf32>
    %227 = arith.mulf %225, %226 : vector<2x32x32xf32>
    %cst_61 = arith.constant 1.000000e-01 : f32
    %228 = vector.broadcast %cst_61 : f32 to vector<2x32x32xf32>
    %229 = arith.mulf %228, %227 : vector<2x32x32xf32>
    %230 = arith.addf %193, %229 : vector<2x32x32xf32>
    %cst_62 = arith.constant 0.899999976 : f32
    %231 = vector.broadcast %cst_62 : f32 to vector<2x32xf32>
    %232 = arith.mulf %231, %198 : vector<2x32xf32>
    %233 = vector.extract_strided_slice %5 {offsets = [0, 6, 0], sizes = [2, 1, 32], strides = [1, 1, 1]} : vector<2x8x32xf32> to vector<2x1x32xf32>
    %234 = vector.shape_cast %233 : vector<2x1x32xf32> to vector<2x32xf32>
    %235 = arith.addf %232, %234 : vector<2x32xf32>
    %236 = math.tanh %235 : vector<2x32xf32>
    %237 = vector.shape_cast %236 : vector<2x32xf32> to vector<2x1x32xf32>
    %238 = vector.broadcast %237 : vector<2x1x32xf32> to vector<2x32x32xf32>
    %239 = arith.mulf %230, %238 : vector<2x32x32xf32>
    %cst_63 = arith.constant dense<0.000000e+00> : vector<2x32xf32>
    %240 = vector.multi_reduction <add>, %239, %cst_63 [2] : vector<2x32x32xf32> to vector<2x32xf32>
    %cst_64 = arith.constant 2.000000e-01 : f32
    %241 = vector.broadcast %cst_64 : f32 to vector<2x32xf32>
    %242 = arith.mulf %241, %240 : vector<2x32xf32>
    %cst_65 = arith.constant 0.899999976 : f32
    %243 = vector.broadcast %cst_65 : f32 to vector<2x32xf32>
    %244 = arith.mulf %243, %211 : vector<2x32xf32>
    %245 = vector.extract_strided_slice %6 {offsets = [0, 6, 0], sizes = [2, 1, 32], strides = [1, 1, 1]} : vector<2x8x32xf32> to vector<2x1x32xf32>
    %246 = vector.shape_cast %245 : vector<2x1x32xf32> to vector<2x32xf32>
    %247 = arith.addf %244, %246 : vector<2x32xf32>
    %248 = arith.addf %247, %242 : vector<2x32xf32>
    %249 = math.tanh %248 : vector<2x32xf32>
    %cst_66 = arith.constant 0.951229453 : f32
    %250 = vector.broadcast %cst_66 : f32 to vector<2x32xf32>
    %251 = arith.mulf %250, %217 : vector<2x32xf32>
    %cst_67 = arith.constant 0.0487705767 : f32
    %252 = vector.broadcast %cst_67 : f32 to vector<2x32xf32>
    %253 = arith.mulf %252, %236 : vector<2x32xf32>
    %254 = arith.addf %251, %253 : vector<2x32xf32>
    %cst_68 = arith.constant 0.951229453 : f32
    %255 = vector.broadcast %cst_68 : f32 to vector<2x32xf32>
    %256 = arith.mulf %255, %222 : vector<2x32xf32>
    %cst_69 = arith.constant 0.0487705767 : f32
    %257 = vector.broadcast %cst_69 : f32 to vector<2x32xf32>
    %258 = arith.mulf %257, %249 : vector<2x32xf32>
    %259 = arith.addf %256, %258 : vector<2x32xf32>
    %260 = vector.shape_cast %259 : vector<2x32xf32> to vector<2x32x1xf32>
    %261 = vector.shape_cast %254 : vector<2x32xf32> to vector<2x1x32xf32>
    %262 = vector.broadcast %260 : vector<2x32x1xf32> to vector<2x32x32xf32>
    %263 = vector.broadcast %261 : vector<2x1x32xf32> to vector<2x32x32xf32>
    %264 = arith.mulf %262, %263 : vector<2x32x32xf32>
    %cst_70 = arith.constant 1.000000e-01 : f32
    %265 = vector.broadcast %cst_70 : f32 to vector<2x32x32xf32>
    %266 = arith.mulf %265, %264 : vector<2x32x32xf32>
    %267 = arith.addf %230, %266 : vector<2x32x32xf32>
    %cst_71 = arith.constant 0.899999976 : f32
    %268 = vector.broadcast %cst_71 : f32 to vector<2x32xf32>
    %269 = arith.mulf %268, %235 : vector<2x32xf32>
    %270 = vector.extract_strided_slice %5 {offsets = [0, 7, 0], sizes = [2, 1, 32], strides = [1, 1, 1]} : vector<2x8x32xf32> to vector<2x1x32xf32>
    %271 = vector.shape_cast %270 : vector<2x1x32xf32> to vector<2x32xf32>
    %272 = arith.addf %269, %271 : vector<2x32xf32>
    %273 = math.tanh %272 : vector<2x32xf32>
    %274 = vector.shape_cast %273 : vector<2x32xf32> to vector<2x1x32xf32>
    %275 = vector.broadcast %274 : vector<2x1x32xf32> to vector<2x32x32xf32>
    %276 = arith.mulf %267, %275 : vector<2x32x32xf32>
    %cst_72 = arith.constant dense<0.000000e+00> : vector<2x32xf32>
    %277 = vector.multi_reduction <add>, %276, %cst_72 [2] : vector<2x32x32xf32> to vector<2x32xf32>
    %cst_73 = arith.constant 2.000000e-01 : f32
    %278 = vector.broadcast %cst_73 : f32 to vector<2x32xf32>
    %279 = arith.mulf %278, %277 : vector<2x32xf32>
    %cst_74 = arith.constant 0.899999976 : f32
    %280 = vector.broadcast %cst_74 : f32 to vector<2x32xf32>
    %281 = arith.mulf %280, %248 : vector<2x32xf32>
    %282 = vector.extract_strided_slice %6 {offsets = [0, 7, 0], sizes = [2, 1, 32], strides = [1, 1, 1]} : vector<2x8x32xf32> to vector<2x1x32xf32>
    %283 = vector.shape_cast %282 : vector<2x1x32xf32> to vector<2x32xf32>
    %284 = arith.addf %281, %283 : vector<2x32xf32>
    %285 = arith.addf %284, %279 : vector<2x32xf32>
    %286 = math.tanh %285 : vector<2x32xf32>
    %cst_75 = arith.constant 0.951229453 : f32
    %287 = vector.broadcast %cst_75 : f32 to vector<2x32xf32>
    %288 = arith.mulf %287, %254 : vector<2x32xf32>
    %cst_76 = arith.constant 0.0487705767 : f32
    %289 = vector.broadcast %cst_76 : f32 to vector<2x32xf32>
    %290 = arith.mulf %289, %273 : vector<2x32xf32>
    %291 = arith.addf %288, %290 : vector<2x32xf32>
    %cst_77 = arith.constant 0.951229453 : f32
    %292 = vector.broadcast %cst_77 : f32 to vector<2x32xf32>
    %293 = arith.mulf %292, %259 : vector<2x32xf32>
    %cst_78 = arith.constant 0.0487705767 : f32
    %294 = vector.broadcast %cst_78 : f32 to vector<2x32xf32>
    %295 = arith.mulf %294, %286 : vector<2x32xf32>
    %296 = arith.addf %293, %295 : vector<2x32xf32>
    %297 = vector.shape_cast %296 : vector<2x32xf32> to vector<2x32x1xf32>
    %298 = vector.shape_cast %291 : vector<2x32xf32> to vector<2x1x32xf32>
    %299 = vector.broadcast %297 : vector<2x32x1xf32> to vector<2x32x32xf32>
    %300 = vector.broadcast %298 : vector<2x1x32xf32> to vector<2x32x32xf32>
    %301 = arith.mulf %299, %300 : vector<2x32x32xf32>
    %cst_79 = arith.constant 1.000000e-01 : f32
    %302 = vector.broadcast %cst_79 : f32 to vector<2x32x32xf32>
    %303 = arith.mulf %302, %301 : vector<2x32x32xf32>
    %304 = arith.addf %267, %303 : vector<2x32x32xf32>
    %c0_80 = arith.constant 0 : index
    %c0_81 = arith.constant 0 : index
    %c0_82 = arith.constant 0 : index
    %305 = vector.load %arg4[%c0_80, %c0_81, %c0_82] : memref<2x32x32xf32, #tpu.memory_space<vmem>>, vector<2x32x32xf32>
    tpu.vector_store %arg4[%c0_80, %c0_81, %c0_82], %304 {strides = array<i32>} : memref<2x32x32xf32, #tpu.memory_space<vmem>>, vector<2x32x32xf32>,
    %306 = tpu.concatenate %14, %51, %88, %125, %162, %199, %236, %273 in 1 : vector<2x32xf32>, vector<2x32xf32>, vector<2x32xf32>, vector<2x32xf32>, vector<2x32xf32>, vector<2x32xf32>, vector<2x32xf32>, vector<2x32xf32> -> vector<2x256xf32>
    %c0_83 = arith.constant 0 : index
    %c0_84 = arith.constant 0 : index
    %c0_85 = arith.constant 0 : index
    %307 = vector.load %arg5[%c0_83, %c0_84, %c0_85] : memref<2x1x256xf32, #tpu.memory_space<vmem>>, vector<2x1x256xf32>
    %308 = vector.shape_cast %307 : vector<2x1x256xf32> to vector<2x256xf32>
    %309 = vector.shape_cast %306 : vector<2x256xf32> to vector<2x1x256xf32>
    tpu.vector_store %arg5[%c0_83, %c0_84, %c0_85], %309 {strides = array<i32>} : memref<2x1x256xf32, #tpu.memory_space<vmem>>, vector<2x1x256xf32>,
    %310 = tpu.concatenate %27, %64, %101, %138, %175, %212, %249, %286 in 1 : vector<2x32xf32>, vector<2x32xf32>, vector<2x32xf32>, vector<2x32xf32>, vector<2x32xf32>, vector<2x32xf32>, vector<2x32xf32>, vector<2x32xf32> -> vector<2x256xf32>
    %c0_86 = arith.constant 0 : index
    %c0_87 = arith.constant 0 : index
    %c0_88 = arith.constant 0 : index
    %311 = vector.load %arg6[%c0_86, %c0_87, %c0_88] : memref<2x1x256xf32, #tpu.memory_space<vmem>>, vector<2x1x256xf32>
    %312 = vector.shape_cast %311 : vector<2x1x256xf32> to vector<2x256xf32>
    %313 = vector.shape_cast %310 : vector<2x256xf32> to vector<2x1x256xf32>
    tpu.vector_store %arg6[%c0_86, %c0_87, %c0_88], %313 {strides = array<i32>} : memref<2x1x256xf32, #tpu.memory_space<vmem>>, vector<2x1x256xf32>,
    %314 = tpu.concatenate %272, %285, %291, %296 in 1 : vector<2x32xf32>, vector<2x32xf32>, vector<2x32xf32>, vector<2x32xf32> -> vector<2x128xf32>
    %c0_89 = arith.constant 0 : index
    %c0_90 = arith.constant 0 : index
    %c0_91 = arith.constant 0 : index
    %315 = vector.load %arg7[%c0_89, %c0_90, %c0_91] : memref<2x1x128xf32, #tpu.memory_space<vmem>>, vector<2x1x128xf32>
    %316 = vector.shape_cast %315 : vector<2x1x128xf32> to vector<2x128xf32>
    %317 = vector.shape_cast %314 : vector<2x128xf32> to vector<2x1x128xf32>
    tpu.vector_store %arg7[%c0_89, %c0_90, %c0_91], %317 {strides = array<i32>} : memref<2x1x128xf32, #tpu.memory_space<vmem>>, vector<2x1x128xf32>,
    %318 = tpu.concatenate %175, %212, %249, %286 in 1 : vector<2x32xf32>, vector<2x32xf32>, vector<2x32xf32>, vector<2x32xf32> -> vector<2x128xf32>
    %c0_92 = arith.constant 0 : index
    %c0_93 = arith.constant 0 : index
    %c0_94 = arith.constant 0 : index
    %319 = vector.load %arg8[%c0_92, %c0_93, %c0_94] : memref<2x1x128xf32, #tpu.memory_space<vmem>>, vector<2x1x128xf32>
    %320 = vector.shape_cast %319 : vector<2x1x128xf32> to vector<2x128xf32>
    %321 = vector.shape_cast %318 : vector<2x128xf32> to vector<2x1x128xf32>
    tpu.vector_store %arg8[%c0_92, %c0_93, %c0_94], %321 {strides = array<i32>} : memref<2x1x128xf32, #tpu.memory_space<vmem>>, vector<2x1x128xf32>,
    return
  }
  func.func @transform_0(%arg0: i32) -> (i32, i32, i32) {
    %c0_i32 = arith.constant 0 : i32
    %c0_i32_0 = arith.constant 0 : i32
    %c0_i32_1 = arith.constant 0 : i32
    return %arg0, %c0_i32, %c0_i32_0 : i32, i32, i32
  }
  func.func @transform_1(%arg0: i32) -> (i32, i32) {
    %c0_i32 = arith.constant 0 : i32
    %c0_i32_0 = arith.constant 0 : i32
    %c0_i32_1 = arith.constant 0 : i32
    return %c0_i32, %c0_i32_0 : i32, i32
  }
  func.func @transform_2(%arg0: i32) -> (i32, i32, i32) {
    %c0_i32 = arith.constant 0 : i32
    %c0_i32_0 = arith.constant 0 : i32
    %c0_i32_1 = arith.constant 0 : i32
    return %arg0, %c0_i32, %c0_i32_0 : i32, i32, i32
  }
  func.func @transform_3(%arg0: i32) -> (i32, i32, i32) {
    %c0_i32 = arith.constant 0 : i32
    %c0_i32_0 = arith.constant 0 : i32
    %c0_i32_1 = arith.constant 0 : i32
    return %arg0, %c0_i32, %c0_i32_0 : i32, i32, i32
  }
  func.func @transform_4(%arg0: i32) -> (i32, i32, i32) {
    %c0_i32 = arith.constant 0 : i32
    %c0_i32_0 = arith.constant 0 : i32
    %c0_i32_1 = arith.constant 0 : i32
    return %arg0, %c0_i32, %c0_i32_0 : i32, i32, i32
  }
  func.func @transform_5(%arg0: i32) -> (i32, i32, i32) {
    %c0_i32 = arith.constant 0 : i32
    %c0_i32_0 = arith.constant 0 : i32
    %c0_i32_1 = arith.constant 0 : i32
    return %arg0, %c0_i32, %c0_i32_0 : i32, i32, i32
  }
  func.func @transform_6(%arg0: i32) -> (i32, i32, i32) {
    %c0_i32 = arith.constant 0 : i32
    %c0_i32_0 = arith.constant 0 : i32
    %c0_i32_1 = arith.constant 0 : i32
    return %arg0, %c0_i32, %c0_i32_0 : i32, i32, i32
  }
  func.func @transform_7(%arg0: i32) -> (i32, i32, i32) {
    %c0_i32 = arith.constant 0 : i32
    %c0_i32_0 = arith.constant 0 : i32
    %c0_i32_1 = arith.constant 0 : i32
    return %arg0, %c0_i32, %c0_i32_0 : i32, i32, i32
  }
}

</mosaic_0001>

<llo_original>
// kernel: squeeze.4
$region0: #{squeeze.4}
  %s0 = inlined_call_operand.vmem [shape: f32[2,256], index: 0, kind: input, shape index: {}]
  %s1 = inlined_call_operand.hbm [shape: f32[2,8,32], index: 1, kind: output, shape index: {}]
  $region1: #{squeeze.4} parent=0
    #allocation0 [shape = 'u8[8192]{0}', space=vmem, size = 0x2000, scoped, tag = 'operand span for operand 1']
    #allocation1 [shape = 's32[1]{0}', space=sflag, size = 0x4, scoped, tag = 'scoped memory for squeeze.4']
    #allocation2 [shape = 'u8[8192]{0}', space=vmem, size = 0x2000, scoped, tag = 'scoped mem for input reshape']
    %2 = vsyncpa [#allocation1], 0
    %s4 = sshll.u32 1, 2
    %s5 = ssub.s32 %s4, 1
    %s6 = scalar_lea.vmem %s0, 2
    %v7 = vld [vmem:[%s6] sm:%s5]
    %s8 = scalar_lea.vmem [#allocation2], 8
    %9 = vst [vmem:[%s8] sm:%s5] %v7
    %v10 = vld [vmem:[%s0] sm:%s5]
    %11 = vst [vmem:[#allocation2] sm:%s5] %v10
    %v12 = vld [vmem:[#allocation2] sm:$0x3]
    %vm13 = vcmask 261120
    %14 = vst.msk [vmem:[#allocation0] ss:$8 sm:$0x3] %vm13, %v12
    %s15 = scalar_lea.vmem [#allocation2], 8
    %v16 = vld [vmem:[%s15] sm:$0x3]
    %vm17 = vcmask 261120
    %s18 = scalar_lea.vmem [#allocation0], 4
    %19 = vst.msk [vmem:[%s18] ss:$8 sm:$0x3] %vm17, %v16
    %v20 = vld.sshfl [vmem:[#allocation2] sm:$0xff pattern:$0x99999180]
    %21 = vrot.lane.b32.xlu0 %v20, 96
    %v22 = vpop.permute.xlu0 %21
    %vm23 = vcmask 261120
    %s24 = scalar_lea.vmem [#allocation0], 1
    %25 = vst.msk [vmem:[%s24] ss:$4 sm:$0xf] %vm23, %v22
    %v26 = vld.sshfl [vmem:[#allocation2] sm:$0xff pattern:$0x99999180]
    %27 = vrot.lane.b32.xlu0 %v26, 64
    %v28 = vpop.permute.xlu0 %27
    %vm29 = vcmask 261120
    %s30 = scalar_lea.vmem [#allocation0], 2
    %31 = vst.msk [vmem:[%s30] ss:$4 sm:$0xf] %vm29, %v28
    %v32 = vld.sshfl [vmem:[#allocation2] sm:$0xff pattern:$0x99999180]
    %33 = vrot.lane.b32.xlu0 %v32, 32
    %v34 = vpop.permute.xlu0 %33
    %vm35 = vcmask 261120
    %s36 = scalar_lea.vmem [#allocation0], 3
    %37 = vst.msk [vmem:[%s36] ss:$4 sm:$0xf] %vm35, %v34
    %s39 = ssub.s32 256, 256
    %40 = vsyncadd [#allocation1], %s39
    %s42 = sshll.u32 [#allocation0], 4
    %s43 = int_to_ptr.vmem [resolvable:$true] %s42
    %45 = dma.vmem_to_hbm [thread:$0]  %s43, 256, %s1, [#allocation1]
    %46 = dma.done [#allocation1], 256
    %47 = vsyncpa [#allocation1], 1

// kernel: squeeze.7
$region0: #{squeeze.7}
  %s0 = inlined_call_operand.vmem [shape: f32[2,128], index: 0, kind: input, shape index: {}]
  %s1 = inlined_call_operand.hbm [shape: f32[2,4,32], index: 1, kind: output, shape index: {}]
  $region1: #{squeeze.7} parent=0
    #allocation0 [shape = 'u8[4096]{0}', space=vmem, size = 0x1000, scoped, tag = 'operand span for operand 1']
    #allocation1 [shape = 's32[1]{0}', space=sflag, size = 0x4, scoped, tag = 'scoped memory for squeeze.7']
    #allocation2 [shape = 'u8[8192]{0}', space=vmem, size = 0x2000, scoped, tag = 'scoped mem for output reshape']
    #allocation3 [shape = 'u8[4096]{0}', space=vmem, size = 0x1000, scoped, tag = 'scoped mem for input reshape']
    %2 = vsyncpa [#allocation1], 0
    %s4 = sshll.u32 1, 2
    %s5 = ssub.s32 %s4, 1
    %v6 = vld [vmem:[%s0] sm:%s5]
    %7 = vst [vmem:[#allocation3] sm:%s5] %v6
    %v8 = vld [vmem:[#allocation3] sm:$0x3]
    %vm9 = vcmask 261120
    %10 = vst.msk [vmem:[#allocation2] ss:$8 sm:$0x3] %vm9, %v8
    %v11 = vld [vmem:[#allocation3] sm:$0x3]
    %12 = vrot.lane.b32.xlu0 %v11, 96
    %v13 = vpop.permute.xlu0 %12
    %vm14 = vcmask 261120
    %s15 = scalar_lea.vmem [#allocation2], 1
    %16 = vst.msk [vmem:[%s15] ss:$8 sm:$0x3] %vm14, %v13
    %v17 = vld [vmem:[#allocation3] sm:$0x3]
    %18 = vrot.lane.b32.xlu0 %v17, 64
    %v19 = vpop.permute.xlu0 %18
    %vm20 = vcmask 261120
    %s21 = scalar_lea.vmem [#allocation2], 2
    %22 = vst.msk [vmem:[%s21] ss:$8 sm:$0x3] %vm20, %v19
    %v23 = vld [vmem:[#allocation3] sm:$0x3]
    %24 = vrot.lane.b32.xlu0 %v23, 32
    %v25 = vpop.permute.xlu0 %24
    %vm26 = vcmask 261120
    %s27 = scalar_lea.vmem [#allocation2], 3
    %28 = vst.msk [vmem:[%s27] ss:$8 sm:$0x3] %vm26, %v25
    %s30 = sshll.u32 1, 4
    %s31 = ssub.s32 %s30, 1
    %v33 = vld [vmem:[#allocation2] sm:%s31]
    %s34 = sshll.u32 1, 4
    %s35 = ssub.s32 %s34, 1
    %36 = vst [vmem:[#allocation0] sm:%s35] %v33
    %s37 = scalar_lea.vmem [#allocation2], 8
    %v38 = vld [vmem:[%s37] sm:%s31]
    %s39 = sshll.u32 1, 4
    %s40 = ssub.s32 %s39, 1
    %s41 = scalar_lea.vmem [#allocation0], 4
    %42 = vst [vmem:[%s41] sm:%s40] %v38
    %s44 = ssub.s32 128, 128
    %45 = vsyncadd [#allocation1], %s44
    %s47 = sshll.u32 [#allocation0], 4
    %s48 = int_to_ptr.vmem [resolvable:$true] %s47
    %50 = dma.vmem_to_hbm [thread:$0]  %s48, 128, %s1, [#allocation1]
    %51 = dma.done [#allocation1], 128
    %52 = vsyncpa [#allocation1], 1

// kernel: memory_layer_forward.1
$region0: #{memory_layer_forward.1}
  #allocation0 [shape = 'u32[]', space=smem, size = 0x4, offset = 0x4, fixed_abs, tag = 'smem constant byte address 0x4 - core index']
  #allocation1 [shape = 'u32[144,128]{1,0:T(1,128)}', space=vmem, size = 0x12000, scoped, tag = 'internal scratch']
  %s0 = inlined_call_operand.hbm [shape: f32[2,8,32], index: 0, kind: input, shape index: {}]
  %s1 = inlined_call_operand.hbm [shape: f32[32,64], index: 1, kind: input, shape index: {}]
  %s2 = inlined_call_operand.hbm [shape: f32[2,32,32], index: 2, kind: input, shape index: {}]
  %s3 = inlined_call_operand.hbm [shape: f32[2,32,32], index: 3, kind: output, shape index: {0}]
  %s4 = inlined_call_operand.vmem [shape: f32[2,1,256], index: 4, kind: output, shape index: {1}]
  %s5 = inlined_call_operand.vmem [shape: f32[2,1,256], index: 5, kind: output, shape index: {2}]
  %s6 = inlined_call_operand.vmem [shape: f32[2,1,128], index: 6, kind: output, shape index: {3}]
  %s7 = inlined_call_operand.vmem [shape: f32[2,1,128], index: 7, kind: output, shape index: {4}]
  %8 = xla_tuple %s3, %s4, %s5, %s6, %s7
  %s9 = sld [smem:[#allocation0]]
  $region66: #{memory_layer_forward.1} parent=0
    _
  %s11 = ssub.s32 1, %s9
  %s12 = scalar_select 0, %s11, %s9
  $region1: #{memory_layer_forward.1} parent=0
    #allocation2 [shape = 'u8[8192]{0}', space=vmem, size = 0x2000, scoped, tag = 'input window, operand 0, single buffered']
    #allocation3 [shape = 's32[1]{0}', space=sflag, size = 0x4, scoped, tag = 'scoped memory for memory_layer_forward.1']
    #allocation4 [shape = 's32[1]{0}', space=sflag, size = 0x4, scoped, tag = 'scoped memory for memory_layer_forward.1']
    #allocation5 [shape = 'u8[16384]{0}', space=vmem, size = 0x4000, scoped, tag = 'input window, operand 1, single buffered']
    #allocation6 [shape = 's32[1]{0}', space=sflag, size = 0x4, scoped, tag = 'scoped memory for memory_layer_forward.1']
    #allocation7 [shape = 'u8[32768]{0}', space=vmem, size = 0x8000, scoped, tag = 'input window, operand 2, single buffered']
    #allocation8 [shape = 'u8[32768]{0}', space=vmem, size = 0x8000, scoped, tag = 'output window, operand 0, single buffered']
    %13 = vsyncpa [#allocation3], 0
    %14 = vsyncpa [#allocation6], 0
    %15 = vsyncpa [#allocation4], 0
    // Predicated region
    $region2: #{memory_layer_forward.1} parent=1 // pred_check
      _
    $region3: #{memory_layer_forward.1} parent=1 // pred_check_branch
      %17 = sbr.rel (0) target = $region5
    $region4: #{memory_layer_forward.1} parent=1 // pred_region
      %s19 = ssub.s32 256, 256
      %20 = vsyncadd [#allocation3], %s19
      %s21 = sshll.u32 [#allocation2], 4
      %s22 = int_to_ptr.vmem [resolvable:$true] %s21
      %27 = dma.hbm_to_vmem [thread:$0]  %s0, 256, %s22, [#allocation3], 128, 128, 8
    $region5: #{memory_layer_forward.1} parent=1 // pred_fallthru
      _
    // Predicated region
    $region6: #{memory_layer_forward.1} parent=1 // pred_check
      _
    $region7: #{memory_layer_forward.1} parent=1 // pred_check_branch
      %29 = sbr.rel (0) target = $region9
    $region8: #{memory_layer_forward.1} parent=1 // pred_region
      %s31 = ssub.s32 512, 512
      %32 = vsyncadd [#allocation6], %s31
      %s33 = sshll.u32 [#allocation5], 4
      %s34 = int_to_ptr.vmem [resolvable:$true] %s33
      %39 = dma.hbm_to_vmem [thread:$0]  %s1, 512, %s34, [#allocation6], 128, 128, 8
    $region9: #{memory_layer_forward.1} parent=1 // pred_fallthru
      _
    // Predicated region
    $region10: #{memory_layer_forward.1} parent=1 // pred_check
      _
    $region11: #{memory_layer_forward.1} parent=1 // pred_check_branch
      %41 = sbr.rel (0) target = $region13
    $region12: #{memory_layer_forward.1} parent=1 // pred_region
      %s43 = ssub.s32 1024, 1024
      %44 = vsyncadd [#allocation6], %s43
      %s45 = sshll.u32 [#allocation7], 4
      %s46 = int_to_ptr.vmem [resolvable:$true] %s45
      %51 = dma.hbm_to_vmem [thread:$0]  %s2, 1024, %s46, [#allocation6], 128, 128, 8
    $region13: #{memory_layer_forward.1} parent=1 // pred_fallthru
      _
    // Predicated region
    $region14: #{memory_layer_forward.1} parent=1 // pred_check
      _
    $region15: #{memory_layer_forward.1} parent=1 // pred_check_branch
      %53 = sbr.rel (0) target = $region17
    $region16: #{memory_layer_forward.1} parent=1 // pred_region
      %54 = dma.done [#allocation3], 256
    $region17: #{memory_layer_forward.1} parent=1 // pred_fallthru
      _
    // Predicated region
    $region18: #{memory_layer_forward.1} parent=1 // pred_check
      _
    $region19: #{memory_layer_forward.1} parent=1 // pred_check_branch
      %56 = sbr.rel (0) target = $region21
    $region20: #{memory_layer_forward.1} parent=1 // pred_region
      %57 = dma.done [#allocation6], 512
    $region21: #{memory_layer_forward.1} parent=1 // pred_fallthru
      _
    // Predicated region
    $region22: #{memory_layer_forward.1} parent=1 // pred_check
      _
    $region23: #{memory_layer_forward.1} parent=1 // pred_check_branch
      %59 = sbr.rel (0) target = $region25
    $region24: #{memory_layer_forward.1} parent=1 // pred_region
      %60 = dma.done [#allocation6], 1024
    $region25: #{memory_layer_forward.1} parent=1 // pred_fallthru
      _
    %v61 = vld [vmem:[#allocation2] sm:$0xff]
    %v62 = vld [vmem:[#allocation2 + $0x8] sm:$0xff]
    %v63 = vld [vmem:[#allocation5] sm:$0xff]
    %v64 = vld [vmem:[#allocation5 + $0x8] sm:$0xff]
    %v65 = vld [vmem:[#allocation5 + $0x10] sm:$0xff]
    %v66 = vld [vmem:[#allocation5 + $0x18] sm:$0xff]
    %vm67 = vcmask 261120
    %v69 = vsel %vm67, %v61, 0
    %v72 = vsel %vm67, %v62, 0
    %74 = vmatprep.subr.mxu0 0.0
    %75 = vmatpush1.msra.mxu0 0.0
    %76 = vmatprep.subr.mxu0 0.0
    %77 = vmatpush1.msra.mxu0 0.0
    %78 = vmatprep.subr.mxu0 0.0
    %79 = vmatpush1.msra.mxu0 0.0
    %80 = vmatprep.subr.mxu0 0.0
    %81 = vmatpush1.msra.mxu0 0.0
    %82 = vmatprep.subr.mxu0 0.0
    %83 = vmatpush1.msra.mxu0 0.0
    %84 = vmatprep.subr.mxu0 0.0
    %85 = vmatpush1.msra.mxu0 0.0
    %86 = vmatprep.subr.mxu0 0.0
    %87 = vmatpush1.msra.mxu0 0.0
    %88 = vmatprep.subr.mxu0 0.0
    %89 = vmatpush1.msra.mxu0 0.0
    %90 = vmatprep.subr.mxu0 0.0
    %91 = vmatpush1.msra.mxu0 0.0
    %92 = vmatprep.subr.mxu0 0.0
    %93 = vmatpush1.msra.mxu0 0.0
    %94 = vmatprep.subr.mxu0 0.0
    %95 = vmatpush1.msra.mxu0 0.0
    %96 = vmatprep.subr.mxu0 0.0
    %97 = vmatpush1.msra.mxu0 0.0
    %98 = vmatprep.subr.mxu0 0.0
    %99 = vmatpush1.msra.mxu0 %v66
    %100 = vmatprep.subr.mxu0 0.0
    %101 = vmatpush1.msra.mxu0 %v65
    %102 = vmatprep.subr.mxu0 0.0
    %103 = vmatpush1.msra.mxu0 %v64
    %104 = vmatprep.subr.mxu0 0.0
    %105 = vmatpush1.msra.mxu0 %v63
    %106 = vmatprep.subr.mxu0 0.0
    %107 = vmatpush2.msra.mxu0 0.0
    %108 = vmatprep.subr.mxu0 0.0
    %109 = vmatpush2.msra.mxu0 0.0
    %110 = vmatprep.subr.mxu0 0.0
    %111 = vmatpush2.msra.mxu0 0.0
    %112 = vmatprep.subr.mxu0 0.0
    %113 = vmatpush2.msra.mxu0 0.0
    %114 = vmatprep.subr.mxu0 0.0
    %115 = vmatpush2.msra.mxu0 0.0
    %116 = vmatprep.subr.mxu0 0.0
    %117 = vmatpush2.msra.mxu0 0.0
    %118 = vmatprep.subr.mxu0 0.0
    %119 = vmatpush2.msra.mxu0 0.0
    %120 = vmatprep.subr.mxu0 0.0
    %121 = vmatpush2.msra.mxu0 0.0
    %122 = vmatprep.subr.mxu0 0.0
    %123 = vmatpush2.msra.mxu0 0.0
    %124 = vmatprep.subr.mxu0 0.0
    %125 = vmatpush2.msra.mxu0 0.0
    %126 = vmatprep.subr.mxu0 0.0
    %127 = vmatpush2.msra.mxu0 0.0
    %128 = vmatprep.subr.mxu0 0.0
    %129 = vmatpush2.msra.mxu0 0.0
    %130 = vmatprep.subr.mxu0 0.0
    %131 = vmatpush2.msra.mxu0 0.0
    %132 = vmatprep.subr.mxu0 0.0
    %133 = vmatpush2.msra.mxu0 0.0
    %134 = vmatprep.subr.mxu0 0.0
    %135 = vmatpush2.msra.mxu0 0.0
    %136 = vmatprep.subr.mxu0 0.0
    %137 = vmatpush2.msra.mxu0 0.0
    %138 = vmatprep.mubr.f32.mxu0 0.0
    %139 = vmatmul.mubr.f32.gmra.mxu0 %v69
    %v140 = vpop.f32.mrf.mxu0
    %v141 = vadd.f32 0.0, %v140
    %v142 = vpop.f32.mrf.mxu0
    %143 = vmatprep.mubr.f32.mxu0 0.0
    %144 = vmatmul.mubr.f32.gmra.mxu0 %v72
    %v145 = vpop.f32.mrf.mxu0
    %v146 = vadd.f32 0.0, %v145
    %v147 = vpop.f32.mrf.mxu0
    %148 = vdwg.mxu0
    %v149 = vld [vmem:[#allocation7] sm:$0xff]
    %v150 = vld [vmem:[#allocation7 + $0x8] sm:$0xff]
    %v151 = vld [vmem:[#allocation7 + $0x10] sm:$0xff]
    %v152 = vld [vmem:[#allocation7 + $0x18] sm:$0xff]
    %v153 = vld [vmem:[#allocation7 + $0x20] sm:$0xff]
    %v154 = vld [vmem:[#allocation7 + $0x28] sm:$0xff]
    %v155 = vld [vmem:[#allocation7 + $0x30] sm:$0xff]
    %v156 = vld [vmem:[#allocation7 + $0x38] sm:$0xff]
    %v157 = vadd.f32 %v141, 0.0
    %v158 = vadd.f32 %v146, 0.0
    %v159 = vtanh.pop %v157
    %v160 = vtanh.pop %v158
    %v161 = vlaneseq
    %v162 = vshrl.u32 %v161, 7
    %v163 = vsub.s32 0, %v162
    %v164 = vrot.slane %v159, %v163
    %v165 = vlaneseq
    %v166 = vshrl.u32 %v165, 7
    %v167 = vsub.s32 0, %v166
    %v168 = vrot.slane %v160, %v167
    %v169 = vmul.f32 %v149, %v164
    %v170 = vmul.f32 %v150, %v164
    %v171 = vmul.f32 %v151, %v164
    %v172 = vmul.f32 %v152, %v164
    %v173 = vmul.f32 %v153, %v168
    %v174 = vmul.f32 %v154, %v168
    %v175 = vmul.f32 %v155, %v168
    %v176 = vmul.f32 %v156, %v168
    %v177 = vsel %vm67, %v169, 0.0
    %178 = vadd.xlane.f32.xlu0 %v177
    %v179 = vpop.xlane.xlu0 %178
    %v180 = vsel %vm67, %v170, 0.0
    %181 = vadd.xlane.f32.xlu0 %v180
    %v182 = vpop.xlane.xlu0 %181
    %v183 = vsel %vm67, %v171, 0.0
    %184 = vadd.xlane.f32.xlu0 %v183
    %v185 = vpop.xlane.xlu0 %184
    %v186 = vsel %vm67, %v172, 0.0
    %187 = vadd.xlane.f32.xlu0 %v186
    %v188 = vpop.xlane.xlu0 %187
    %v189 = vsel %vm67, %v173, 0.0
    %190 = vadd.xlane.f32.xlu0 %v189
    %v191 = vpop.xlane.xlu0 %190
    %v192 = vsel %vm67, %v174, 0.0
    %193 = vadd.xlane.f32.xlu0 %v192
    %v194 = vpop.xlane.xlu0 %193
    %v195 = vsel %vm67, %v175, 0.0
    %196 = vadd.xlane.f32.xlu0 %v195
    %v197 = vpop.xlane.xlu0 %196
    %v198 = vsel %vm67, %v176, 0.0
    %199 = vadd.xlane.f32.xlu0 %v198
    %v200 = vpop.xlane.xlu0 %199
    %v201 = vmul.f32 %v179, 0.2
    %v202 = vmul.f32 %v182, 0.2
    %v203 = vmul.f32 %v185, 0.2
    %v204 = vmul.f32 %v188, 0.2
    %v205 = vmul.f32 %v191, 0.2
    %v206 = vmul.f32 %v194, 0.2
    %v207 = vmul.f32 %v197, 0.2
    %v208 = vmul.f32 %v200, 0.2
    %v217 = vlaneseq
    %v218 = vand.u32 %v217, 127
    %v219 = vadd.s32 %v218, 4294967264
    %v220 = vlaneseq
    %v221 = vshrl.u32 %v220, 7
    %v222 = vsub.s32 %v219, %v221
    %v223 = vrot.slane %v201, %v222
    %v224 = vadd.s32 %v218, 4294967256
    %v225 = vlaneseq
    %v226 = vshrl.u32 %v225, 7
    %v227 = vsub.s32 %v224, %v226
    %v228 = vrot.slane %v202, %v227
    %vm229 = vcmask 392512
    %v230 = vsel %vm229, %v228, %v223
    %v231 = vadd.s32 %v218, 4294967248
    %v232 = vlaneseq
    %v233 = vshrl.u32 %v232, 7
    %v234 = vsub.s32 %v231, %v233
    %v235 = vrot.slane %v203, %v234
    %vm236 = vcmask 458112
    %v237 = vsel %vm236, %v235, %v230
    %v238 = vadd.s32 %v218, 4294967240
    %v239 = vlaneseq
    %v240 = vshrl.u32 %v239, 7
    %v241 = vsub.s32 %v238, %v240
    %v242 = vrot.slane %v204, %v241
    %vm243 = vcmask 523712
    %v244 = vsel %vm243, %v242, %v237
    %v245 = vlaneseq
    %v246 = vshrl.u32 %v245, 7
    %v247 = vsub.s32 %v219, %v246
    %v248 = vrot.slane %v205, %v247
    %v249 = vlaneseq
    %v250 = vshrl.u32 %v249, 7
    %v251 = vsub.s32 %v224, %v250
    %v252 = vrot.slane %v206, %v251
    %v253 = vsel %vm229, %v252, %v248
    %v254 = vlaneseq
    %v255 = vshrl.u32 %v254, 7
    %v256 = vsub.s32 %v231, %v255
    %v257 = vrot.slane %v207, %v256
    %v258 = vsel %vm236, %v257, %v253
    %v259 = vlaneseq
    %v260 = vshrl.u32 %v259, 7
    %v261 = vsub.s32 %v238, %v260
    %v262 = vrot.slane %v208, %v261
    %v263 = vsel %vm243, %v262, %v258
    %v266 = vadd.f32 %v157, %v244
    %v267 = vadd.f32 %v158, %v263
    %v268 = vtanh.pop %v266
    %v269 = vtanh.pop %v267
    %v270 = vmul.f32 %v159, 0.048770577
    %v271 = vmul.f32 %v160, 0.048770577
    %v272 = vadd.f32 %v270, 0.0
    %v273 = vadd.f32 %v271, 0.0
    %v274 = vmul.f32 %v268, 0.048770577
    %v275 = vmul.f32 %v269, 0.048770577
    %v276 = vadd.f32 %v274, 0.0
    %v277 = vadd.f32 %v275, 0.0
    %v278 = vlaneseq
    %v279 = vshrl.u32 %v278, 7
    %v280 = vsub.s32 0, %v279
    %v281 = vrot.slane %v276, %v280
    %s283 = sor.u32 256, 32
    %284 = vbcast.lane.b32.xlu0 %v281, %s283
    %v285 = vpop.permute.xlu0 %284
    %s287 = sor.u32 256, 40
    %288 = vbcast.lane.b32.xlu0 %v281, %s287
    %v289 = vpop.permute.xlu0 %288
    %s291 = sor.u32 256, 48
    %292 = vbcast.lane.b32.xlu0 %v281, %s291
    %v293 = vpop.permute.xlu0 %292
    %s295 = sor.u32 256, 56
    %296 = vbcast.lane.b32.xlu0 %v281, %s295
    %v297 = vpop.permute.xlu0 %296
    %v298 = vlaneseq
    %v299 = vshrl.u32 %v298, 7
    %v300 = vsub.s32 0, %v299
    %v301 = vrot.slane %v277, %v300
    %s303 = sor.u32 256, 32
    %304 = vbcast.lane.b32.xlu0 %v301, %s303
    %v305 = vpop.permute.xlu0 %304
    %s307 = sor.u32 256, 40
    %308 = vbcast.lane.b32.xlu0 %v301, %s307
    %v309 = vpop.permute.xlu0 %308
    %s311 = sor.u32 256, 48
    %312 = vbcast.lane.b32.xlu0 %v301, %s311
    %v313 = vpop.permute.xlu0 %312
    %s315 = sor.u32 256, 56
    %316 = vbcast.lane.b32.xlu0 %v301, %s315
    %v317 = vpop.permute.xlu0 %316
    %v318 = vlaneseq
    %v319 = vshrl.u32 %v318, 7
    %v320 = vsub.s32 0, %v319
    %v321 = vrot.slane %v272, %v320
    %v322 = vlaneseq
    %v323 = vshrl.u32 %v322, 7
    %v324 = vsub.s32 0, %v323
    %v325 = vrot.slane %v273, %v324
    %v326 = vmul.f32 %v285, %v321
    %v327 = vmul.f32 %v289, %v321
    %v328 = vmul.f32 %v293, %v321
    %v329 = vmul.f32 %v297, %v321
    %v330 = vmul.f32 %v305, %v325
    %v331 = vmul.f32 %v309, %v325
    %v332 = vmul.f32 %v313, %v325
    %v333 = vmul.f32 %v317, %v325
    %v334 = vmul.f32 %v326, 0.1
    %v335 = vmul.f32 %v327, 0.1
    %v336 = vmul.f32 %v328, 0.1
    %v337 = vmul.f32 %v329, 0.1
    %v338 = vmul.f32 %v330, 0.1
    %v339 = vmul.f32 %v331, 0.1
    %v340 = vmul.f32 %v332, 0.1
    %v341 = vmul.f32 %v333, 0.1
    %v342 = vadd.f32 %v149, %v334
    %v343 = vadd.f32 %v150, %v335
    %v344 = vadd.f32 %v151, %v336
    %v345 = vadd.f32 %v152, %v337
    %v346 = vadd.f32 %v153, %v338
    %v347 = vadd.f32 %v154, %v339
    %v348 = vadd.f32 %v155, %v340
    %v349 = vadd.f32 %v156, %v341
    %v350 = vmul.f32 %v157, 0.9
    %v351 = vmul.f32 %v158, 0.9
    %v354 = vrot.slane %v141, 1
    %v355 = vrot.slane %v146, 1
    %v358 = vadd.f32 %v350, %v354
    %v359 = vadd.f32 %v351, %v355
    %v360 = vtanh.pop %v358
    %v361 = vtanh.pop %v359
    %v362 = vlaneseq
    %v363 = vshrl.u32 %v362, 7
    %v364 = vsub.s32 0, %v363
    %v365 = vrot.slane %v360, %v364
    %v366 = vlaneseq
    %v367 = vshrl.u32 %v366, 7
    %v368 = vsub.s32 0, %v367
    %v369 = vrot.slane %v361, %v368
    %v370 = vmul.f32 %v342, %v365
    %v371 = vmul.f32 %v343, %v365
    %v372 = vmul.f32 %v344, %v365
    %v373 = vmul.f32 %v345, %v365
    %v374 = vmul.f32 %v346, %v369
    %v375 = vmul.f32 %v347, %v369
    %v376 = vmul.f32 %v348, %v369
    %v377 = vmul.f32 %v349, %v369
    %v378 = vsel %vm67, %v370, 0.0
    %379 = vadd.xlane.f32.xlu0 %v378
    %v380 = vpop.xlane.xlu0 %379
    %v381 = vsel %vm67, %v371, 0.0
    %382 = vadd.xlane.f32.xlu0 %v381
    %v383 = vpop.xlane.xlu0 %382
    %v384 = vsel %vm67, %v372, 0.0
    %385 = vadd.xlane.f32.xlu0 %v384
    %v386 = vpop.xlane.xlu0 %385
    %v387 = vsel %vm67, %v373, 0.0
    %388 = vadd.xlane.f32.xlu0 %v387
    %v389 = vpop.xlane.xlu0 %388
    %v390 = vsel %vm67, %v374, 0.0
    %391 = vadd.xlane.f32.xlu0 %v390
    %v392 = vpop.xlane.xlu0 %391
    %v393 = vsel %vm67, %v375, 0.0
    %394 = vadd.xlane.f32.xlu0 %v393
    %v395 = vpop.xlane.xlu0 %394
    %v396 = vsel %vm67, %v376, 0.0
    %397 = vadd.xlane.f32.xlu0 %v396
    %v398 = vpop.xlane.xlu0 %397
    %v399 = vsel %vm67, %v377, 0.0
    %400 = vadd.xlane.f32.xlu0 %v399
    %v401 = vpop.xlane.xlu0 %400
    %v402 = vmul.f32 %v380, 0.2
    %v403 = vmul.f32 %v383, 0.2
    %v404 = vmul.f32 %v386, 0.2
    %v405 = vmul.f32 %v389, 0.2
    %v406 = vmul.f32 %v392, 0.2
    %v407 = vmul.f32 %v395, 0.2
    %v408 = vmul.f32 %v398, 0.2
    %v409 = vmul.f32 %v401, 0.2
    %v410 = vmul.f32 %v266, 0.9
    %v411 = vmul.f32 %v267, 0.9
    %v412 = vadd.f32 %v410, %v354
    %v413 = vadd.f32 %v411, %v355
    %v422 = vlaneseq
    %v423 = vshrl.u32 %v422, 7
    %v424 = vsub.s32 %v219, %v423
    %v425 = vrot.slane %v402, %v424
    %v426 = vlaneseq
    %v427 = vshrl.u32 %v426, 7
    %v428 = vsub.s32 %v224, %v427
    %v429 = vrot.slane %v403, %v428
    %v430 = vsel %vm229, %v429, %v425
    %v431 = vlaneseq
    %v432 = vshrl.u32 %v431, 7
    %v433 = vsub.s32 %v231, %v432
    %v434 = vrot.slane %v404, %v433
    %v435 = vsel %vm236, %v434, %v430
    %v436 = vlaneseq
    %v437 = vshrl.u32 %v436, 7
    %v438 = vsub.s32 %v238, %v437
    %v439 = vrot.slane %v405, %v438
    %v440 = vsel %vm243, %v439, %v435
    %v441 = vlaneseq
    %v442 = vshrl.u32 %v441, 7
    %v443 = vsub.s32 %v219, %v442
    %v444 = vrot.slane %v406, %v443
    %v445 = vlaneseq
    %v446 = vshrl.u32 %v445, 7
    %v447 = vsub.s32 %v224, %v446
    %v448 = vrot.slane %v407, %v447
    %v449 = vsel %vm229, %v448, %v444
    %v450 = vlaneseq
    %v451 = vshrl.u32 %v450, 7
    %v452 = vsub.s32 %v231, %v451
    %v453 = vrot.slane %v408, %v452
    %v454 = vsel %vm236, %v453, %v449
    %v455 = vlaneseq
    %v456 = vshrl.u32 %v455, 7
    %v457 = vsub.s32 %v238, %v456
    %v458 = vrot.slane %v409, %v457
    %v459 = vsel %vm243, %v458, %v454
    %v462 = vadd.f32 %v412, %v440
    %v463 = vadd.f32 %v413, %v459
    %v464 = vtanh.pop %v462
    %v465 = vtanh.pop %v463
    %v466 = vmul.f32 %v272, 0.95122945
    %v467 = vmul.f32 %v273, 0.95122945
    %v468 = vmul.f32 %v360, 0.048770577
    %v469 = vmul.f32 %v361, 0.048770577
    %v470 = vadd.f32 %v466, %v468
    %v471 = vadd.f32 %v467, %v469
    %v472 = vmul.f32 %v276, 0.95122945
    %v473 = vmul.f32 %v277, 0.95122945
    %v474 = vmul.f32 %v464, 0.048770577
    %v475 = vmul.f32 %v465, 0.048770577
    %v476 = vadd.f32 %v472, %v474
    %v477 = vadd.f32 %v473, %v475
    %v478 = vlaneseq
    %v479 = vshrl.u32 %v478, 7
    %v480 = vsub.s32 0, %v479
    %v481 = vrot.slane %v476, %v480
    %s483 = sor.u32 256, 32
    %484 = vbcast.lane.b32.xlu0 %v481, %s483
    %v485 = vpop.permute.xlu0 %484
    %s487 = sor.u32 256, 40
    %488 = vbcast.lane.b32.xlu0 %v481, %s487
    %v489 = vpop.permute.xlu0 %488
    %s491 = sor.u32 256, 48
    %492 = vbcast.lane.b32.xlu0 %v481, %s491
    %v493 = vpop.permute.xlu0 %492
    %s495 = sor.u32 256, 56
    %496 = vbcast.lane.b32.xlu0 %v481, %s495
    %v497 = vpop.permute.xlu0 %496
    %v498 = vlaneseq
    %v499 = vshrl.u32 %v498, 7
    %v500 = vsub.s32 0, %v499
    %v501 = vrot.slane %v477, %v500
    %s503 = sor.u32 256, 32
    %504 = vbcast.lane.b32.xlu0 %v501, %s503
    %v505 = vpop.permute.xlu0 %504
    %s507 = sor.u32 256, 40
    %508 = vbcast.lane.b32.xlu0 %v501, %s507
    %v509 = vpop.permute.xlu0 %508
    %s511 = sor.u32 256, 48
    %512 = vbcast.lane.b32.xlu0 %v501, %s511
    %v513 = vpop.permute.xlu0 %512
    %s515 = sor.u32 256, 56
    %516 = vbcast.lane.b32.xlu0 %v501, %s515
    %v517 = vpop.permute.xlu0 %516
    %v518 = vlaneseq
    %v519 = vshrl.u32 %v518, 7
    %v520 = vsub.s32 0, %v519
    %v521 = vrot.slane %v470, %v520
    %v522 = vlaneseq
    %v523 = vshrl.u32 %v522, 7
    %v524 = vsub.s32 0, %v523
    %v525 = vrot.slane %v471, %v524
    %v526 = vmul.f32 %v485, %v521
    %v527 = vmul.f32 %v489, %v521
    %v528 = vmul.f32 %v493, %v521
    %v529 = vmul.f32 %v497, %v521
    %v530 = vmul.f32 %v505, %v525
    %v531 = vmul.f32 %v509, %v525
    %v532 = vmul.f32 %v513, %v525
    %v533 = vmul.f32 %v517, %v525
    %v534 = vmul.f32 %v526, 0.1
    %v535 = vmul.f32 %v527, 0.1
    %v536 = vmul.f32 %v528, 0.1
    %v537 = vmul.f32 %v529, 0.1
    %v538 = vmul.f32 %v530, 0.1
    %v539 = vmul.f32 %v531, 0.1
    %v540 = vmul.f32 %v532, 0.1
    %v541 = vmul.f32 %v533, 0.1
    %v542 = vadd.f32 %v342, %v534
    %v543 = vadd.f32 %v343, %v535
    %v544 = vadd.f32 %v344, %v536
    %v545 = vadd.f32 %v345, %v537
    %v546 = vadd.f32 %v346, %v538
    %v547 = vadd.f32 %v347, %v539
    %v548 = vadd.f32 %v348, %v540
    %v549 = vadd.f32 %v349, %v541
    %v550 = vmul.f32 %v358, 0.9
    %v551 = vmul.f32 %v359, 0.9
    %v552 = vrot.slane %v141, 2
    %v553 = vrot.slane %v146, 2
    %v556 = vadd.f32 %v550, %v552
    %v557 = vadd.f32 %v551, %v553
    %v558 = vtanh.pop %v556
    %v559 = vtanh.pop %v557
    %v560 = vlaneseq
    %v561 = vshrl.u32 %v560, 7
    %v562 = vsub.s32 0, %v561
    %v563 = vrot.slane %v558, %v562
    %v564 = vlaneseq
    %v565 = vshrl.u32 %v564, 7
    %v566 = vsub.s32 0, %v565
    %v567 = vrot.slane %v559, %v566
    %v568 = vmul.f32 %v542, %v563
    %v569 = vmul.f32 %v543, %v563
    %v570 = vmul.f32 %v544, %v563
    %v571 = vmul.f32 %v545, %v563
    %v572 = vmul.f32 %v546, %v567
    %v573 = vmul.f32 %v547, %v567
    %v574 = vmul.f32 %v548, %v567
    %v575 = vmul.f32 %v549, %v567
    %v576 = vsel %vm67, %v568, 0.0
    %577 = vadd.xlane.f32.xlu0 %v576
    %v578 = vpop.xlane.xlu0 %577
    %v579 = vsel %vm67, %v569, 0.0
    %580 = vadd.xlane.f32.xlu0 %v579
    %v581 = vpop.xlane.xlu0 %580
    %v582 = vsel %vm67, %v570, 0.0
    %583 = vadd.xlane.f32.xlu0 %v582
    %v584 = vpop.xlane.xlu0 %583
    %v585 = vsel %vm67, %v571, 0.0
    %586 = vadd.xlane.f32.xlu0 %v585
    %v587 = vpop.xlane.xlu0 %586
    %v588 = vsel %vm67, %v572, 0.0
    %589 = vadd.xlane.f32.xlu0 %v588
    %v590 = vpop.xlane.xlu0 %589
    %v591 = vsel %vm67, %v573, 0.0
    %592 = vadd.xlane.f32.xlu0 %v591
    %v593 = vpop.xlane.xlu0 %592
    %v594 = vsel %vm67, %v574, 0.0
    %595 = vadd.xlane.f32.xlu0 %v594
    %v596 = vpop.xlane.xlu0 %595
    %v597 = vsel %vm67, %v575, 0.0
    %598 = vadd.xlane.f32.xlu0 %v597
    %v599 = vpop.xlane.xlu0 %598
    %v600 = vmul.f32 %v578, 0.2
    %v601 = vmul.f32 %v581, 0.2
    %v602 = vmul.f32 %v584, 0.2
    %v603 = vmul.f32 %v587, 0.2
    %v604 = vmul.f32 %v590, 0.2
    %v605 = vmul.f32 %v593, 0.2
    %v606 = vmul.f32 %v596, 0.2
    %v607 = vmul.f32 %v599, 0.2
    %v608 = vmul.f32 %v462, 0.9
    %v609 = vmul.f32 %v463, 0.9
    %v610 = vadd.f32 %v608, %v552
    %v611 = vadd.f32 %v609, %v553
    %v620 = vlaneseq
    %v621 = vshrl.u32 %v620, 7
    %v622 = vsub.s32 %v219, %v621
    %v623 = vrot.slane %v600, %v622
    %v624 = vlaneseq
    %v625 = vshrl.u32 %v624, 7
    %v626 = vsub.s32 %v224, %v625
    %v627 = vrot.slane %v601, %v626
    %v628 = vsel %vm229, %v627, %v623
    %v629 = vlaneseq
    %v630 = vshrl.u32 %v629, 7
    %v631 = vsub.s32 %v231, %v630
    %v632 = vrot.slane %v602, %v631
    %v633 = vsel %vm236, %v632, %v628
    %v634 = vlaneseq
    %v635 = vshrl.u32 %v634, 7
    %v636 = vsub.s32 %v238, %v635
    %v637 = vrot.slane %v603, %v636
    %v638 = vsel %vm243, %v637, %v633
    %v639 = vlaneseq
    %v640 = vshrl.u32 %v639, 7
    %v641 = vsub.s32 %v219, %v640
    %v642 = vrot.slane %v604, %v641
    %v643 = vlaneseq
    %v644 = vshrl.u32 %v643, 7
    %v645 = vsub.s32 %v224, %v644
    %v646 = vrot.slane %v605, %v645
    %v647 = vsel %vm229, %v646, %v642
    %v648 = vlaneseq
    %v649 = vshrl.u32 %v648, 7
    %v650 = vsub.s32 %v231, %v649
    %v651 = vrot.slane %v606, %v650
    %v652 = vsel %vm236, %v651, %v647
    %v653 = vlaneseq
    %v654 = vshrl.u32 %v653, 7
    %v655 = vsub.s32 %v238, %v654
    %v656 = vrot.slane %v607, %v655
    %v657 = vsel %vm243, %v656, %v652
    %v660 = vadd.f32 %v610, %v638
    %v661 = vadd.f32 %v611, %v657
    %v662 = vtanh.pop %v660
    %v663 = vtanh.pop %v661
    %v664 = vmul.f32 %v470, 0.95122945
    %v665 = vmul.f32 %v471, 0.95122945
    %v666 = vmul.f32 %v558, 0.048770577
    %v667 = vmul.f32 %v559, 0.048770577
    %v668 = vadd.f32 %v664, %v666
    %v669 = vadd.f32 %v665, %v667
    %v670 = vmul.f32 %v476, 0.95122945
    %v671 = vmul.f32 %v477, 0.95122945
    %v672 = vmul.f32 %v662, 0.048770577
    %v673 = vmul.f32 %v663, 0.048770577
    %v674 = vadd.f32 %v670, %v672
    %v675 = vadd.f32 %v671, %v673
    %v676 = vlaneseq
    %v677 = vshrl.u32 %v676, 7
    %v678 = vsub.s32 0, %v677
    %v679 = vrot.slane %v674, %v678
    %s681 = sor.u32 256, 32
    %682 = vbcast.lane.b32.xlu0 %v679, %s681
    %v683 = vpop.permute.xlu0 %682
    %s685 = sor.u32 256, 40
    %686 = vbcast.lane.b32.xlu0 %v679, %s685
    %v687 = vpop.permute.xlu0 %686
    %s689 = sor.u32 256, 48
    %690 = vbcast.lane.b32.xlu0 %v679, %s689
    %v691 = vpop.permute.xlu0 %690
    %s693 = sor.u32 256, 56
    %694 = vbcast.lane.b32.xlu0 %v679, %s693
    %v695 = vpop.permute.xlu0 %694
    %v696 = vlaneseq
    %v697 = vshrl.u32 %v696, 7
    %v698 = vsub.s32 0, %v697
    %v699 = vrot.slane %v675, %v698
    %s701 = sor.u32 256, 32
    %702 = vbcast.lane.b32.xlu0 %v699, %s701
    %v703 = vpop.permute.xlu0 %702
    %s705 = sor.u32 256, 40
    %706 = vbcast.lane.b32.xlu0 %v699, %s705
    %v707 = vpop.permute.xlu0 %706
    %s709 = sor.u32 256, 48
    %710 = vbcast.lane.b32.xlu0 %v699, %s709
    %v711 = vpop.permute.xlu0 %710
    %s713 = sor.u32 256, 56
    %714 = vbcast.lane.b32.xlu0 %v699, %s713
    %v715 = vpop.permute.xlu0 %714
    %v716 = vlaneseq
    %v717 = vshrl.u32 %v716, 7
    %v718 = vsub.s32 0, %v717
    %v719 = vrot.slane %v668, %v718
    %v720 = vlaneseq
    %v721 = vshrl.u32 %v720, 7
    %v722 = vsub.s32 0, %v721
    %v723 = vrot.slane %v669, %v722
    %v724 = vmul.f32 %v683, %v719
    %v725 = vmul.f32 %v687, %v719
    %v726 = vmul.f32 %v691, %v719
    %v727 = vmul.f32 %v695, %v719
    %v728 = vmul.f32 %v703, %v723
    %v729 = vmul.f32 %v707, %v723
    %v730 = vmul.f32 %v711, %v723
    %v731 = vmul.f32 %v715, %v723
    %v732 = vmul.f32 %v724, 0.1
    %v733 = vmul.f32 %v725, 0.1
    %v734 = vmul.f32 %v726, 0.1
    %v735 = vmul.f32 %v727, 0.1
    %v736 = vmul.f32 %v728, 0.1
    %v737 = vmul.f32 %v729, 0.1
    %v738 = vmul.f32 %v730, 0.1
    %v739 = vmul.f32 %v731, 0.1
    %v740 = vadd.f32 %v542, %v732
    %v741 = vadd.f32 %v543, %v733
    %v742 = vadd.f32 %v544, %v734
    %v743 = vadd.f32 %v545, %v735
    %v744 = vadd.f32 %v546, %v736
    %v745 = vadd.f32 %v547, %v737
    %v746 = vadd.f32 %v548, %v738
    %v747 = vadd.f32 %v549, %v739
    %v748 = vmul.f32 %v556, 0.9
    %v749 = vmul.f32 %v557, 0.9
    %v750 = vrot.slane %v141, 3
    %v751 = vrot.slane %v146, 3
    %v754 = vadd.f32 %v748, %v750
    %v755 = vadd.f32 %v749, %v751
    %v756 = vtanh.pop %v754
    %v757 = vtanh.pop %v755
    %v758 = vlaneseq
    %v759 = vshrl.u32 %v758, 7
    %v760 = vsub.s32 0, %v759
    %v761 = vrot.slane %v756, %v760
    %v762 = vlaneseq
    %v763 = vshrl.u32 %v762, 7
    %v764 = vsub.s32 0, %v763
    %v765 = vrot.slane %v757, %v764
    %v766 = vmul.f32 %v740, %v761
    %v767 = vmul.f32 %v741, %v761
    %v768 = vmul.f32 %v742, %v761
    %v769 = vmul.f32 %v743, %v761
    %v770 = vmul.f32 %v744, %v765
    %v771 = vmul.f32 %v745, %v765
    %v772 = vmul.f32 %v746, %v765
    %v773 = vmul.f32 %v747, %v765
    %v774 = vsel %vm67, %v766, 0.0
    %775 = vadd.xlane.f32.xlu0 %v774
    %v776 = vpop.xlane.xlu0 %775
    %v777 = vsel %vm67, %v767, 0.0
    %778 = vadd.xlane.f32.xlu0 %v777
    %v779 = vpop.xlane.xlu0 %778
    %v780 = vsel %vm67, %v768, 0.0
    %781 = vadd.xlane.f32.xlu0 %v780
    %v782 = vpop.xlane.xlu0 %781
    %v783 = vsel %vm67, %v769, 0.0
    %784 = vadd.xlane.f32.xlu0 %v783
    %v785 = vpop.xlane.xlu0 %784
    %v786 = vsel %vm67, %v770, 0.0
    %787 = vadd.xlane.f32.xlu0 %v786
    %v788 = vpop.xlane.xlu0 %787
    %v789 = vsel %vm67, %v771, 0.0
    %790 = vadd.xlane.f32.xlu0 %v789
    %v791 = vpop.xlane.xlu0 %790
    %v792 = vsel %vm67, %v772, 0.0
    %793 = vadd.xlane.f32.xlu0 %v792
    %v794 = vpop.xlane.xlu0 %793
    %v795 = vsel %vm67, %v773, 0.0
    %796 = vadd.xlane.f32.xlu0 %v795
    %v797 = vpop.xlane.xlu0 %796
    %v798 = vmul.f32 %v776, 0.2
    %v799 = vmul.f32 %v779, 0.2
    %v800 = vmul.f32 %v782, 0.2
    %v801 = vmul.f32 %v785, 0.2
    %v802 = vmul.f32 %v788, 0.2
    %v803 = vmul.f32 %v791, 0.2
    %v804 = vmul.f32 %v794, 0.2
    %v805 = vmul.f32 %v797, 0.2
    %v806 = vmul.f32 %v660, 0.9
    %v807 = vmul.f32 %v661, 0.9
    %v808 = vadd.f32 %v806, %v750
    %v809 = vadd.f32 %v807, %v751
    %v818 = vlaneseq
    %v819 = vshrl.u32 %v818, 7
    %v820 = vsub.s32 %v219, %v819
    %v821 = vrot.slane %v798, %v820
    %v822 = vlaneseq
    %v823 = vshrl.u32 %v822, 7
    %v824 = vsub.s32 %v224, %v823
    %v825 = vrot.slane %v799, %v824
    %v826 = vsel %vm229, %v825, %v821
    %v827 = vlaneseq
    %v828 = vshrl.u32 %v827, 7
    %v829 = vsub.s32 %v231, %v828
    %v830 = vrot.slane %v800, %v829
    %v831 = vsel %vm236, %v830, %v826
    %v832 = vlaneseq
    %v833 = vshrl.u32 %v832, 7
    %v834 = vsub.s32 %v238, %v833
    %v835 = vrot.slane %v801, %v834
    %v836 = vsel %vm243, %v835, %v831
    %v837 = vlaneseq
    %v838 = vshrl.u32 %v837, 7
    %v839 = vsub.s32 %v219, %v838
    %v840 = vrot.slane %v802, %v839
    %v841 = vlaneseq
    %v842 = vshrl.u32 %v841, 7
    %v843 = vsub.s32 %v224, %v842
    %v844 = vrot.slane %v803, %v843
    %v845 = vsel %vm229, %v844, %v840
    %v846 = vlaneseq
    %v847 = vshrl.u32 %v846, 7
    %v848 = vsub.s32 %v231, %v847
    %v849 = vrot.slane %v804, %v848
    %v850 = vsel %vm236, %v849, %v845
    %v851 = vlaneseq
    %v852 = vshrl.u32 %v851, 7
    %v853 = vsub.s32 %v238, %v852
    %v854 = vrot.slane %v805, %v853
    %v855 = vsel %vm243, %v854, %v850
    %v858 = vadd.f32 %v808, %v836
    %v859 = vadd.f32 %v809, %v855
    %v860 = vtanh.pop %v858
    %v861 = vtanh.pop %v859
    %v862 = vmul.f32 %v668, 0.95122945
    %v863 = vmul.f32 %v669, 0.95122945
    %v864 = vmul.f32 %v756, 0.048770577
    %v865 = vmul.f32 %v757, 0.048770577
    %v866 = vadd.f32 %v862, %v864
    %v867 = vadd.f32 %v863, %v865
    %v868 = vmul.f32 %v674, 0.95122945
    %v869 = vmul.f32 %v675, 0.95122945
    %v870 = vmul.f32 %v860, 0.048770577
    %v871 = vmul.f32 %v861, 0.048770577
    %v872 = vadd.f32 %v868, %v870
    %v873 = vadd.f32 %v869, %v871
    %v874 = vlaneseq
    %v875 = vshrl.u32 %v874, 7
    %v876 = vsub.s32 0, %v875
    %v877 = vrot.slane %v872, %v876
    %s879 = sor.u32 256, 32
    %880 = vbcast.lane.b32.xlu0 %v877, %s879
    %v881 = vpop.permute.xlu0 %880
    %s883 = sor.u32 256, 40
    %884 = vbcast.lane.b32.xlu0 %v877, %s883
    %v885 = vpop.permute.xlu0 %884
    %s887 = sor.u32 256, 48
    %888 = vbcast.lane.b32.xlu0 %v877, %s887
    %v889 = vpop.permute.xlu0 %888
    %s891 = sor.u32 256, 56
    %892 = vbcast.lane.b32.xlu0 %v877, %s891
    %v893 = vpop.permute.xlu0 %892
    %v894 = vlaneseq
    %v895 = vshrl.u32 %v894, 7
    %v896 = vsub.s32 0, %v895
    %v897 = vrot.slane %v873, %v896
    %s899 = sor.u32 256, 32
    %900 = vbcast.lane.b32.xlu0 %v897, %s899
    %v901 = vpop.permute.xlu0 %900
    %s903 = sor.u32 256, 40
    %904 = vbcast.lane.b32.xlu0 %v897, %s903
    %v905 = vpop.permute.xlu0 %904
    %s907 = sor.u32 256, 48
    %908 = vbcast.lane.b32.xlu0 %v897, %s907
    %v909 = vpop.permute.xlu0 %908
    %s911 = sor.u32 256, 56
    %912 = vbcast.lane.b32.xlu0 %v897, %s911
    %v913 = vpop.permute.xlu0 %912
    %v914 = vlaneseq
    %v915 = vshrl.u32 %v914, 7
    %v916 = vsub.s32 0, %v915
    %v917 = vrot.slane %v866, %v916
    %v918 = vlaneseq
    %v919 = vshrl.u32 %v918, 7
    %v920 = vsub.s32 0, %v919
    %v921 = vrot.slane %v867, %v920
    %v922 = vmul.f32 %v881, %v917
    %v923 = vmul.f32 %v885, %v917
    %v924 = vmul.f32 %v889, %v917
    %v925 = vmul.f32 %v893, %v917
    %v926 = vmul.f32 %v901, %v921
    %v927 = vmul.f32 %v905, %v921
    %v928 = vmul.f32 %v909, %v921
    %v929 = vmul.f32 %v913, %v921
    %v930 = vmul.f32 %v922, 0.1
    %v931 = vmul.f32 %v923, 0.1
    %v932 = vmul.f32 %v924, 0.1
    %v933 = vmul.f32 %v925, 0.1
    %v934 = vmul.f32 %v926, 0.1
    %v935 = vmul.f32 %v927, 0.1
    %v936 = vmul.f32 %v928, 0.1
    %v937 = vmul.f32 %v929, 0.1
    %v938 = vadd.f32 %v740, %v930
    %v939 = vadd.f32 %v741, %v931
    %v940 = vadd.f32 %v742, %v932
    %v941 = vadd.f32 %v743, %v933
    %v942 = vadd.f32 %v744, %v934
    %v943 = vadd.f32 %v745, %v935
    %v944 = vadd.f32 %v746, %v936
    %v945 = vadd.f32 %v747, %v937
    %v946 = vmul.f32 %v754, 0.9
    %v947 = vmul.f32 %v755, 0.9
    %v948 = vrot.slane %v141, 4
    %v949 = vrot.slane %v146, 4
    %v952 = vadd.f32 %v946, %v948
    %v953 = vadd.f32 %v947, %v949
    %v954 = vtanh.pop %v952
    %v955 = vtanh.pop %v953
    %v956 = vlaneseq
    %v957 = vshrl.u32 %v956, 7
    %v958 = vsub.s32 0, %v957
    %v959 = vrot.slane %v954, %v958
    %v960 = vlaneseq
    %v961 = vshrl.u32 %v960, 7
    %v962 = vsub.s32 0, %v961
    %v963 = vrot.slane %v955, %v962
    %v964 = vmul.f32 %v938, %v959
    %v965 = vmul.f32 %v939, %v959
    %v966 = vmul.f32 %v940, %v959
    %v967 = vmul.f32 %v941, %v959
    %v968 = vmul.f32 %v942, %v963
    %v969 = vmul.f32 %v943, %v963
    %v970 = vmul.f32 %v944, %v963
    %v971 = vmul.f32 %v945, %v963
    %v972 = vsel %vm67, %v964, 0.0
    %973 = vadd.xlane.f32.xlu0 %v972
    %v974 = vpop.xlane.xlu0 %973
    %v975 = vsel %vm67, %v965, 0.0
    %976 = vadd.xlane.f32.xlu0 %v975
    %v977 = vpop.xlane.xlu0 %976
    %v978 = vsel %vm67, %v966, 0.0
    %979 = vadd.xlane.f32.xlu0 %v978
    %v980 = vpop.xlane.xlu0 %979
    %v981 = vsel %vm67, %v967, 0.0
    %982 = vadd.xlane.f32.xlu0 %v981
    %v983 = vpop.xlane.xlu0 %982
    %v984 = vsel %vm67, %v968, 0.0
    %985 = vadd.xlane.f32.xlu0 %v984
    %v986 = vpop.xlane.xlu0 %985
    %v987 = vsel %vm67, %v969, 0.0
    %988 = vadd.xlane.f32.xlu0 %v987
    %v989 = vpop.xlane.xlu0 %988
    %v990 = vsel %vm67, %v970, 0.0
    %991 = vadd.xlane.f32.xlu0 %v990
    %v992 = vpop.xlane.xlu0 %991
    %v993 = vsel %vm67, %v971, 0.0
    %994 = vadd.xlane.f32.xlu0 %v993
    %v995 = vpop.xlane.xlu0 %994
    %v996 = vmul.f32 %v974, 0.2
    %v997 = vmul.f32 %v977, 0.2
    %v998 = vmul.f32 %v980, 0.2
    %v999 = vmul.f32 %v983, 0.2
    %v1000 = vmul.f32 %v986, 0.2
    %v1001 = vmul.f32 %v989, 0.2
    %v1002 = vmul.f32 %v992, 0.2
    %v1003 = vmul.f32 %v995, 0.2
    %v1004 = vmul.f32 %v858, 0.9
    %v1005 = vmul.f32 %v859, 0.9
    %v1006 = vadd.f32 %v1004, %v948
    %v1007 = vadd.f32 %v1005, %v949
    %v1016 = vlaneseq
    %v1017 = vshrl.u32 %v1016, 7
    %v1018 = vsub.s32 %v219, %v1017
    %v1019 = vrot.slane %v996, %v1018
    %v1020 = vlaneseq
    %v1021 = vshrl.u32 %v1020, 7
    %v1022 = vsub.s32 %v224, %v1021
    %v1023 = vrot.slane %v997, %v1022
    %v1024 = vsel %vm229, %v1023, %v1019
    %v1025 = vlaneseq
    %v1026 = vshrl.u32 %v1025, 7
    %v1027 = vsub.s32 %v231, %v1026
    %v1028 = vrot.slane %v998, %v1027
    %v1029 = vsel %vm236, %v1028, %v1024
    %v1030 = vlaneseq
    %v1031 = vshrl.u32 %v1030, 7
    %v1032 = vsub.s32 %v238, %v1031
    %v1033 = vrot.slane %v999, %v1032
    %v1034 = vsel %vm243, %v1033, %v1029
    %v1035 = vlaneseq
    %v1036 = vshrl.u32 %v1035, 7
    %v1037 = vsub.s32 %v219, %v1036
    %v1038 = vrot.slane %v1000, %v1037
    %v1039 = vlaneseq
    %v1040 = vshrl.u32 %v1039, 7
    %v1041 = vsub.s32 %v224, %v1040
    %v1042 = vrot.slane %v1001, %v1041
    %v1043 = vsel %vm229, %v1042, %v1038
    %v1044 = vlaneseq
    %v1045 = vshrl.u32 %v1044, 7
    %v1046 = vsub.s32 %v231, %v1045
    %v1047 = vrot.slane %v1002, %v1046
    %v1048 = vsel %vm236, %v1047, %v1043
    %v1049 = vlaneseq
    %v1050 = vshrl.u32 %v1049, 7
    %v1051 = vsub.s32 %v238, %v1050
    %v1052 = vrot.slane %v1003, %v1051
    %v1053 = vsel %vm243, %v1052, %v1048
    %v1056 = vadd.f32 %v1006, %v1034
    %v1057 = vadd.f32 %v1007, %v1053
    %v1058 = vtanh.pop %v1056
    %v1059 = vtanh.pop %v1057
    %v1060 = vmul.f32 %v866, 0.95122945
    %v1061 = vmul.f32 %v867, 0.95122945
    %v1062 = vmul.f32 %v954, 0.048770577
    %v1063 = vmul.f32 %v955, 0.048770577
    %v1064 = vadd.f32 %v1060, %v1062
    %v1065 = vadd.f32 %v1061, %v1063
    %v1066 = vmul.f32 %v872, 0.95122945
    %v1067 = vmul.f32 %v873, 0.95122945
    %v1068 = vmul.f32 %v1058, 0.048770577
    %v1069 = vmul.f32 %v1059, 0.048770577
    %v1070 = vadd.f32 %v1066, %v1068
    %v1071 = vadd.f32 %v1067, %v1069
    %v1072 = vlaneseq
    %v1073 = vshrl.u32 %v1072, 7
    %v1074 = vsub.s32 0, %v1073
    %v1075 = vrot.slane %v1070, %v1074
    %s1077 = sor.u32 256, 32
    %1078 = vbcast.lane.b32.xlu0 %v1075, %s1077
    %v1079 = vpop.permute.xlu0 %1078
    %s1081 = sor.u32 256, 40
    %1082 = vbcast.lane.b32.xlu0 %v1075, %s1081
    %v1083 = vpop.permute.xlu0 %1082
    %s1085 = sor.u32 256, 48
    %1086 = vbcast.lane.b32.xlu0 %v1075, %s1085
    %v1087 = vpop.permute.xlu0 %1086
    %s1089 = sor.u32 256, 56
    %1090 = vbcast.lane.b32.xlu0 %v1075, %s1089
    %v1091 = vpop.permute.xlu0 %1090
    %v1092 = vlaneseq
    %v1093 = vshrl.u32 %v1092, 7
    %v1094 = vsub.s32 0, %v1093
    %v1095 = vrot.slane %v1071, %v1094
    %s1097 = sor.u32 256, 32
    %1098 = vbcast.lane.b32.xlu0 %v1095, %s1097
    %v1099 = vpop.permute.xlu0 %1098
    %s1101 = sor.u32 256, 40
    %1102 = vbcast.lane.b32.xlu0 %v1095, %s1101
    %v1103 = vpop.permute.xlu0 %1102
    %s1105 = sor.u32 256, 48
    %1106 = vbcast.lane.b32.xlu0 %v1095, %s1105
    %v1107 = vpop.permute.xlu0 %1106
    %s1109 = sor.u32 256, 56
    %1110 = vbcast.lane.b32.xlu0 %v1095, %s1109
    %v1111 = vpop.permute.xlu0 %1110
    %v1112 = vlaneseq
    %v1113 = vshrl.u32 %v1112, 7
    %v1114 = vsub.s32 0, %v1113
    %v1115 = vrot.slane %v1064, %v1114
    %v1116 = vlaneseq
    %v1117 = vshrl.u32 %v1116, 7
    %v1118 = vsub.s32 0, %v1117
    %v1119 = vrot.slane %v1065, %v1118
    %v1120 = vmul.f32 %v1079, %v1115
    %v1121 = vmul.f32 %v1083, %v1115
    %v1122 = vmul.f32 %v1087, %v1115
    %v1123 = vmul.f32 %v1091, %v1115
    %v1124 = vmul.f32 %v1099, %v1119
    %v1125 = vmul.f32 %v1103, %v1119
    %v1126 = vmul.f32 %v1107, %v1119
    %v1127 = vmul.f32 %v1111, %v1119
    %v1128 = vmul.f32 %v1120, 0.1
    %v1129 = vmul.f32 %v1121, 0.1
    %v1130 = vmul.f32 %v1122, 0.1
    %v1131 = vmul.f32 %v1123, 0.1
    %v1132 = vmul.f32 %v1124, 0.1
    %v1133 = vmul.f32 %v1125, 0.1
    %v1134 = vmul.f32 %v1126, 0.1
    %v1135 = vmul.f32 %v1127, 0.1
    %v1136 = vadd.f32 %v938, %v1128
    %v1137 = vadd.f32 %v939, %v1129
    %v1138 = vadd.f32 %v940, %v1130
    %v1139 = vadd.f32 %v941, %v1131
    %v1140 = vadd.f32 %v942, %v1132
    %v1141 = vadd.f32 %v943, %v1133
    %v1142 = vadd.f32 %v944, %v1134
    %v1143 = vadd.f32 %v945, %v1135
    %v1144 = vmul.f32 %v952, 0.9
    %v1145 = vmul.f32 %v953, 0.9
    %v1146 = vrot.slane %v141, 5
    %v1147 = vrot.slane %v146, 5
    %v1150 = vadd.f32 %v1144, %v1146
    %v1151 = vadd.f32 %v1145, %v1147
    %v1152 = vtanh.pop %v1150
    %v1153 = vtanh.pop %v1151
    %v1154 = vlaneseq
    %v1155 = vshrl.u32 %v1154, 7
    %v1156 = vsub.s32 0, %v1155
    %v1157 = vrot.slane %v1152, %v1156
    %v1158 = vlaneseq
    %v1159 = vshrl.u32 %v1158, 7
    %v1160 = vsub.s32 0, %v1159
    %v1161 = vrot.slane %v1153, %v1160
    %v1162 = vmul.f32 %v1136, %v1157
    %v1163 = vmul.f32 %v1137, %v1157
    %v1164 = vmul.f32 %v1138, %v1157
    %v1165 = vmul.f32 %v1139, %v1157
    %v1166 = vmul.f32 %v1140, %v1161
    %v1167 = vmul.f32 %v1141, %v1161
    %v1168 = vmul.f32 %v1142, %v1161
    %v1169 = vmul.f32 %v1143, %v1161
    %v1170 = vsel %vm67, %v1162, 0.0
    %1171 = vadd.xlane.f32.xlu0 %v1170
    %v1172 = vpop.xlane.xlu0 %1171
    %v1173 = vsel %vm67, %v1163, 0.0
    %1174 = vadd.xlane.f32.xlu0 %v1173
    %v1175 = vpop.xlane.xlu0 %1174
    %v1176 = vsel %vm67, %v1164, 0.0
    %1177 = vadd.xlane.f32.xlu0 %v1176
    %v1178 = vpop.xlane.xlu0 %1177
    %v1179 = vsel %vm67, %v1165, 0.0
    %1180 = vadd.xlane.f32.xlu0 %v1179
    %v1181 = vpop.xlane.xlu0 %1180
    %v1182 = vsel %vm67, %v1166, 0.0
    %1183 = vadd.xlane.f32.xlu0 %v1182
    %v1184 = vpop.xlane.xlu0 %1183
    %v1185 = vsel %vm67, %v1167, 0.0
    %1186 = vadd.xlane.f32.xlu0 %v1185
    %v1187 = vpop.xlane.xlu0 %1186
    %v1188 = vsel %vm67, %v1168, 0.0
    %1189 = vadd.xlane.f32.xlu0 %v1188
    %v1190 = vpop.xlane.xlu0 %1189
    %v1191 = vsel %vm67, %v1169, 0.0
    %1192 = vadd.xlane.f32.xlu0 %v1191
    %v1193 = vpop.xlane.xlu0 %1192
    %v1194 = vmul.f32 %v1172, 0.2
    %v1195 = vmul.f32 %v1175, 0.2
    %v1196 = vmul.f32 %v1178, 0.2
    %v1197 = vmul.f32 %v1181, 0.2
    %v1198 = vmul.f32 %v1184, 0.2
    %v1199 = vmul.f32 %v1187, 0.2
    %v1200 = vmul.f32 %v1190, 0.2
    %v1201 = vmul.f32 %v1193, 0.2
    %v1202 = vmul.f32 %v1056, 0.9
    %v1203 = vmul.f32 %v1057, 0.9
    %v1204 = vadd.f32 %v1202, %v1146
    %v1205 = vadd.f32 %v1203, %v1147
    %v1214 = vlaneseq
    %v1215 = vshrl.u32 %v1214, 7
    %v1216 = vsub.s32 %v219, %v1215
    %v1217 = vrot.slane %v1194, %v1216
    %v1218 = vlaneseq
    %v1219 = vshrl.u32 %v1218, 7
    %v1220 = vsub.s32 %v224, %v1219
    %v1221 = vrot.slane %v1195, %v1220
    %v1222 = vsel %vm229, %v1221, %v1217
    %v1223 = vlaneseq
    %v1224 = vshrl.u32 %v1223, 7
    %v1225 = vsub.s32 %v231, %v1224
    %v1226 = vrot.slane %v1196, %v1225
    %v1227 = vsel %vm236, %v1226, %v1222
    %v1228 = vlaneseq
    %v1229 = vshrl.u32 %v1228, 7
    %v1230 = vsub.s32 %v238, %v1229
    %v1231 = vrot.slane %v1197, %v1230
    %v1232 = vsel %vm243, %v1231, %v1227
    %v1233 = vlaneseq
    %v1234 = vshrl.u32 %v1233, 7
    %v1235 = vsub.s32 %v219, %v1234
    %v1236 = vrot.slane %v1198, %v1235
    %v1237 = vlaneseq
    %v1238 = vshrl.u32 %v1237, 7
    %v1239 = vsub.s32 %v224, %v1238
    %v1240 = vrot.slane %v1199, %v1239
    %v1241 = vsel %vm229, %v1240, %v1236
    %v1242 = vlaneseq
    %v1243 = vshrl.u32 %v1242, 7
    %v1244 = vsub.s32 %v231, %v1243
    %v1245 = vrot.slane %v1200, %v1244
    %v1246 = vsel %vm236, %v1245, %v1241
    %v1247 = vlaneseq
    %v1248 = vshrl.u32 %v1247, 7
    %v1249 = vsub.s32 %v238, %v1248
    %v1250 = vrot.slane %v1201, %v1249
    %v1251 = vsel %vm243, %v1250, %v1246
    %v1254 = vadd.f32 %v1204, %v1232
    %v1255 = vadd.f32 %v1205, %v1251
    %v1256 = vtanh.pop %v1254
    %v1257 = vtanh.pop %v1255
    %v1258 = vmul.f32 %v1064, 0.95122945
    %v1259 = vmul.f32 %v1065, 0.95122945
    %v1260 = vmul.f32 %v1152, 0.048770577
    %v1261 = vmul.f32 %v1153, 0.048770577
    %v1262 = vadd.f32 %v1258, %v1260
    %v1263 = vadd.f32 %v1259, %v1261
    %v1264 = vmul.f32 %v1070, 0.95122945
    %v1265 = vmul.f32 %v1071, 0.95122945
    %v1266 = vmul.f32 %v1256, 0.048770577
    %v1267 = vmul.f32 %v1257, 0.048770577
    %v1268 = vadd.f32 %v1264, %v1266
    %v1269 = vadd.f32 %v1265, %v1267
    %v1270 = vlaneseq
    %v1271 = vshrl.u32 %v1270, 7
    %v1272 = vsub.s32 0, %v1271
    %v1273 = vrot.slane %v1268, %v1272
    %s1275 = sor.u32 256, 32
    %1276 = vbcast.lane.b32.xlu0 %v1273, %s1275
    %v1277 = vpop.permute.xlu0 %1276
    %s1279 = sor.u32 256, 40
    %1280 = vbcast.lane.b32.xlu0 %v1273, %s1279
    %v1281 = vpop.permute.xlu0 %1280
    %s1283 = sor.u32 256, 48
    %1284 = vbcast.lane.b32.xlu0 %v1273, %s1283
    %v1285 = vpop.permute.xlu0 %1284
    %s1287 = sor.u32 256, 56
    %1288 = vbcast.lane.b32.xlu0 %v1273, %s1287
    %v1289 = vpop.permute.xlu0 %1288
    %v1290 = vlaneseq
    %v1291 = vshrl.u32 %v1290, 7
    %v1292 = vsub.s32 0, %v1291
    %v1293 = vrot.slane %v1269, %v1292
    %s1295 = sor.u32 256, 32
    %1296 = vbcast.lane.b32.xlu0 %v1293, %s1295
    %v1297 = vpop.permute.xlu0 %1296
    %s1299 = sor.u32 256, 40
    %1300 = vbcast.lane.b32.xlu0 %v1293, %s1299
    %v1301 = vpop.permute.xlu0 %1300
    %s1303 = sor.u32 256, 48
    %1304 = vbcast.lane.b32.xlu0 %v1293, %s1303
    %v1305 = vpop.permute.xlu0 %1304
    %s1307 = sor.u32 256, 56
    %1308 = vbcast.lane.b32.xlu0 %v1293, %s1307
    %v1309 = vpop.permute.xlu0 %1308
    %v1310 = vlaneseq
    %v1311 = vshrl.u32 %v1310, 7
    %v1312 = vsub.s32 0, %v1311
    %v1313 = vrot.slane %v1262, %v1312
    %v1314 = vlaneseq
    %v1315 = vshrl.u32 %v1314, 7
    %v1316 = vsub.s32 0, %v1315
    %v1317 = vrot.slane %v1263, %v1316
    %v1318 = vmul.f32 %v1277, %v1313
    %v1319 = vmul.f32 %v1281, %v1313
    %v1320 = vmul.f32 %v1285, %v1313
    %v1321 = vmul.f32 %v1289, %v1313
    %v1322 = vmul.f32 %v1297, %v1317
    %v1323 = vmul.f32 %v1301, %v1317
    %v1324 = vmul.f32 %v1305, %v1317
    %v1325 = vmul.f32 %v1309, %v1317
    %v1326 = vmul.f32 %v1318, 0.1
    %v1327 = vmul.f32 %v1319, 0.1
    %v1328 = vmul.f32 %v1320, 0.1
    %v1329 = vmul.f32 %v1321, 0.1
    %v1330 = vmul.f32 %v1322, 0.1
    %v1331 = vmul.f32 %v1323, 0.1
    %v1332 = vmul.f32 %v1324, 0.1
    %v1333 = vmul.f32 %v1325, 0.1
    %v1334 = vadd.f32 %v1136, %v1326
    %v1335 = vadd.f32 %v1137, %v1327
    %v1336 = vadd.f32 %v1138, %v1328
    %v1337 = vadd.f32 %v1139, %v1329
    %v1338 = vadd.f32 %v1140, %v1330
    %v1339 = vadd.f32 %v1141, %v1331
    %v1340 = vadd.f32 %v1142, %v1332
    %v1341 = vadd.f32 %v1143, %v1333
    %v1342 = vmul.f32 %v1150, 0.9
    %v1343 = vmul.f32 %v1151, 0.9
    %v1344 = vrot.slane %v141, 6
    %v1345 = vrot.slane %v146, 6
    %v1348 = vadd.f32 %v1342, %v1344
    %v1349 = vadd.f32 %v1343, %v1345
    %v1350 = vtanh.pop %v1348
    %v1351 = vtanh.pop %v1349
    %v1352 = vlaneseq
    %v1353 = vshrl.u32 %v1352, 7
    %v1354 = vsub.s32 0, %v1353
    %v1355 = vrot.slane %v1350, %v1354
    %v1356 = vlaneseq
    %v1357 = vshrl.u32 %v1356, 7
    %v1358 = vsub.s32 0, %v1357
    %v1359 = vrot.slane %v1351, %v1358
    %v1360 = vmul.f32 %v1334, %v1355
    %v1361 = vmul.f32 %v1335, %v1355
    %v1362 = vmul.f32 %v1336, %v1355
    %v1363 = vmul.f32 %v1337, %v1355
    %v1364 = vmul.f32 %v1338, %v1359
    %v1365 = vmul.f32 %v1339, %v1359
    %v1366 = vmul.f32 %v1340, %v1359
    %v1367 = vmul.f32 %v1341, %v1359
    %v1368 = vsel %vm67, %v1360, 0.0
    %1369 = vadd.xlane.f32.xlu0 %v1368
    %v1370 = vpop.xlane.xlu0 %1369
    %v1371 = vsel %vm67, %v1361, 0.0
    %1372 = vadd.xlane.f32.xlu0 %v1371
    %v1373 = vpop.xlane.xlu0 %1372
    %v1374 = vsel %vm67, %v1362, 0.0
    %1375 = vadd.xlane.f32.xlu0 %v1374
    %v1376 = vpop.xlane.xlu0 %1375
    %v1377 = vsel %vm67, %v1363, 0.0
    %1378 = vadd.xlane.f32.xlu0 %v1377
    %v1379 = vpop.xlane.xlu0 %1378
    %v1380 = vsel %vm67, %v1364, 0.0
    %1381 = vadd.xlane.f32.xlu0 %v1380
    %v1382 = vpop.xlane.xlu0 %1381
    %v1383 = vsel %vm67, %v1365, 0.0
    %1384 = vadd.xlane.f32.xlu0 %v1383
    %v1385 = vpop.xlane.xlu0 %1384
    %v1386 = vsel %vm67, %v1366, 0.0
    %1387 = vadd.xlane.f32.xlu0 %v1386
    %v1388 = vpop.xlane.xlu0 %1387
    %v1389 = vsel %vm67, %v1367, 0.0
    %1390 = vadd.xlane.f32.xlu0 %v1389
    %v1391 = vpop.xlane.xlu0 %1390
    %v1392 = vmul.f32 %v1370, 0.2
    %v1393 = vmul.f32 %v1373, 0.2
    %v1394 = vmul.f32 %v1376, 0.2
    %v1395 = vmul.f32 %v1379, 0.2
    %v1396 = vmul.f32 %v1382, 0.2
    %v1397 = vmul.f32 %v1385, 0.2
    %v1398 = vmul.f32 %v1388, 0.2
    %v1399 = vmul.f32 %v1391, 0.2
    %v1400 = vmul.f32 %v1254, 0.9
    %v1401 = vmul.f32 %v1255, 0.9
    %v1402 = vadd.f32 %v1400, %v1344
    %v1403 = vadd.f32 %v1401, %v1345
    %v1412 = vlaneseq
    %v1413 = vshrl.u32 %v1412, 7
    %v1414 = vsub.s32 %v219, %v1413
    %v1415 = vrot.slane %v1392, %v1414
    %v1416 = vlaneseq
    %v1417 = vshrl.u32 %v1416, 7
    %v1418 = vsub.s32 %v224, %v1417
    %v1419 = vrot.slane %v1393, %v1418
    %v1420 = vsel %vm229, %v1419, %v1415
    %v1421 = vlaneseq
    %v1422 = vshrl.u32 %v1421, 7
    %v1423 = vsub.s32 %v231, %v1422
    %v1424 = vrot.slane %v1394, %v1423
    %v1425 = vsel %vm236, %v1424, %v1420
    %v1426 = vlaneseq
    %v1427 = vshrl.u32 %v1426, 7
    %v1428 = vsub.s32 %v238, %v1427
    %v1429 = vrot.slane %v1395, %v1428
    %v1430 = vsel %vm243, %v1429, %v1425
    %v1431 = vlaneseq
    %v1432 = vshrl.u32 %v1431, 7
    %v1433 = vsub.s32 %v219, %v1432
    %v1434 = vrot.slane %v1396, %v1433
    %v1435 = vlaneseq
    %v1436 = vshrl.u32 %v1435, 7
    %v1437 = vsub.s32 %v224, %v1436
    %v1438 = vrot.slane %v1397, %v1437
    %v1439 = vsel %vm229, %v1438, %v1434
    %v1440 = vlaneseq
    %v1441 = vshrl.u32 %v1440, 7
    %v1442 = vsub.s32 %v231, %v1441
    %v1443 = vrot.slane %v1398, %v1442
    %v1444 = vsel %vm236, %v1443, %v1439
    %v1445 = vlaneseq
    %v1446 = vshrl.u32 %v1445, 7
    %v1447 = vsub.s32 %v238, %v1446
    %v1448 = vrot.slane %v1399, %v1447
    %v1449 = vsel %vm243, %v1448, %v1444
    %v1452 = vadd.f32 %v1402, %v1430
    %v1453 = vadd.f32 %v1403, %v1449
    %v1454 = vtanh.pop %v1452
    %v1455 = vtanh.pop %v1453
    %v1456 = vmul.f32 %v1262, 0.95122945
    %v1457 = vmul.f32 %v1263, 0.95122945
    %v1458 = vmul.f32 %v1350, 0.048770577
    %v1459 = vmul.f32 %v1351, 0.048770577
    %v1460 = vadd.f32 %v1456, %v1458
    %v1461 = vadd.f32 %v1457, %v1459
    %v1462 = vmul.f32 %v1268, 0.95122945
    %v1463 = vmul.f32 %v1269, 0.95122945
    %v1464 = vmul.f32 %v1454, 0.048770577
    %v1465 = vmul.f32 %v1455, 0.048770577
    %v1466 = vadd.f32 %v1462, %v1464
    %v1467 = vadd.f32 %v1463, %v1465
    %v1468 = vlaneseq
    %v1469 = vshrl.u32 %v1468, 7
    %v1470 = vsub.s32 0, %v1469
    %v1471 = vrot.slane %v1466, %v1470
    %s1473 = sor.u32 256, 32
    %1474 = vbcast.lane.b32.xlu0 %v1471, %s1473
    %v1475 = vpop.permute.xlu0 %1474
    %s1477 = sor.u32 256, 40
    %1478 = vbcast.lane.b32.xlu0 %v1471, %s1477
    %v1479 = vpop.permute.xlu0 %1478
    %s1481 = sor.u32 256, 48
    %1482 = vbcast.lane.b32.xlu0 %v1471, %s1481
    %v1483 = vpop.permute.xlu0 %1482
    %s1485 = sor.u32 256, 56
    %1486 = vbcast.lane.b32.xlu0 %v1471, %s1485
    %v1487 = vpop.permute.xlu0 %1486
    %v1488 = vlaneseq
    %v1489 = vshrl.u32 %v1488, 7
    %v1490 = vsub.s32 0, %v1489
    %v1491 = vrot.slane %v1467, %v1490
    %s1493 = sor.u32 256, 32
    %1494 = vbcast.lane.b32.xlu0 %v1491, %s1493
    %v1495 = vpop.permute.xlu0 %1494
    %s1497 = sor.u32 256, 40
    %1498 = vbcast.lane.b32.xlu0 %v1491, %s1497
    %v1499 = vpop.permute.xlu0 %1498
    %s1501 = sor.u32 256, 48
    %1502 = vbcast.lane.b32.xlu0 %v1491, %s1501
    %v1503 = vpop.permute.xlu0 %1502
    %s1505 = sor.u32 256, 56
    %1506 = vbcast.lane.b32.xlu0 %v1491, %s1505
    %v1507 = vpop.permute.xlu0 %1506
    %v1508 = vlaneseq
    %v1509 = vshrl.u32 %v1508, 7
    %v1510 = vsub.s32 0, %v1509
    %v1511 = vrot.slane %v1460, %v1510
    %v1512 = vlaneseq
    %v1513 = vshrl.u32 %v1512, 7
    %v1514 = vsub.s32 0, %v1513
    %v1515 = vrot.slane %v1461, %v1514
    %v1516 = vmul.f32 %v1475, %v1511
    %v1517 = vmul.f32 %v1479, %v1511
    %v1518 = vmul.f32 %v1483, %v1511
    %v1519 = vmul.f32 %v1487, %v1511
    %v1520 = vmul.f32 %v1495, %v1515
    %v1521 = vmul.f32 %v1499, %v1515
    %v1522 = vmul.f32 %v1503, %v1515
    %v1523 = vmul.f32 %v1507, %v1515
    %v1524 = vmul.f32 %v1516, 0.1
    %v1525 = vmul.f32 %v1517, 0.1
    %v1526 = vmul.f32 %v1518, 0.1
    %v1527 = vmul.f32 %v1519, 0.1
    %v1528 = vmul.f32 %v1520, 0.1
    %v1529 = vmul.f32 %v1521, 0.1
    %v1530 = vmul.f32 %v1522, 0.1
    %v1531 = vmul.f32 %v1523, 0.1
    %v1532 = vadd.f32 %v1334, %v1524
    %v1533 = vadd.f32 %v1335, %v1525
    %v1534 = vadd.f32 %v1336, %v1526
    %v1535 = vadd.f32 %v1337, %v1527
    %v1536 = vadd.f32 %v1338, %v1528
    %v1537 = vadd.f32 %v1339, %v1529
    %v1538 = vadd.f32 %v1340, %v1530
    %v1539 = vadd.f32 %v1341, %v1531
    %v1540 = vmul.f32 %v1348, 0.9
    %v1541 = vmul.f32 %v1349, 0.9
    %v1542 = vrot.slane %v141, 7
    %v1543 = vrot.slane %v146, 7
    %v1546 = vadd.f32 %v1540, %v1542
    %v1547 = vadd.f32 %v1541, %v1543
    %v1548 = vtanh.pop %v1546
    %v1549 = vtanh.pop %v1547
    %v1550 = vlaneseq
    %v1551 = vshrl.u32 %v1550, 7
    %v1552 = vsub.s32 0, %v1551
    %v1553 = vrot.slane %v1548, %v1552
    %v1554 = vlaneseq
    %v1555 = vshrl.u32 %v1554, 7
    %v1556 = vsub.s32 0, %v1555
    %v1557 = vrot.slane %v1549, %v1556
    %v1558 = vmul.f32 %v1532, %v1553
    %v1559 = vmul.f32 %v1533, %v1553
    %v1560 = vmul.f32 %v1534, %v1553
    %v1561 = vmul.f32 %v1535, %v1553
    %v1562 = vmul.f32 %v1536, %v1557
    %v1563 = vmul.f32 %v1537, %v1557
    %v1564 = vmul.f32 %v1538, %v1557
    %v1565 = vmul.f32 %v1539, %v1557
    %v1566 = vsel %vm67, %v1558, 0.0
    %1567 = vadd.xlane.f32.xlu0 %v1566
    %v1568 = vpop.xlane.xlu0 %1567
    %v1569 = vsel %vm67, %v1559, 0.0
    %1570 = vadd.xlane.f32.xlu0 %v1569
    %v1571 = vpop.xlane.xlu0 %1570
    %v1572 = vsel %vm67, %v1560, 0.0
    %1573 = vadd.xlane.f32.xlu0 %v1572
    %v1574 = vpop.xlane.xlu0 %1573
    %v1575 = vsel %vm67, %v1561, 0.0
    %1576 = vadd.xlane.f32.xlu0 %v1575
    %v1577 = vpop.xlane.xlu0 %1576
    %v1578 = vsel %vm67, %v1562, 0.0
    %1579 = vadd.xlane.f32.xlu0 %v1578
    %v1580 = vpop.xlane.xlu0 %1579
    %v1581 = vsel %vm67, %v1563, 0.0
    %1582 = vadd.xlane.f32.xlu0 %v1581
    %v1583 = vpop.xlane.xlu0 %1582
    %v1584 = vsel %vm67, %v1564, 0.0
    %1585 = vadd.xlane.f32.xlu0 %v1584
    %v1586 = vpop.xlane.xlu0 %1585
    %v1587 = vsel %vm67, %v1565, 0.0
    %1588 = vadd.xlane.f32.xlu0 %v1587
    %v1589 = vpop.xlane.xlu0 %1588
    %v1590 = vmul.f32 %v1568, 0.2
    %v1591 = vmul.f32 %v1571, 0.2
    %v1592 = vmul.f32 %v1574, 0.2
    %v1593 = vmul.f32 %v1577, 0.2
    %v1594 = vmul.f32 %v1580, 0.2
    %v1595 = vmul.f32 %v1583, 0.2
    %v1596 = vmul.f32 %v1586, 0.2
    %v1597 = vmul.f32 %v1589, 0.2
    %v1598 = vmul.f32 %v1452, 0.9
    %v1599 = vmul.f32 %v1453, 0.9
    %v1600 = vadd.f32 %v1598, %v1542
    %v1601 = vadd.f32 %v1599, %v1543
    %v1610 = vlaneseq
    %v1611 = vshrl.u32 %v1610, 7
    %v1612 = vsub.s32 %v219, %v1611
    %v1613 = vrot.slane %v1590, %v1612
    %v1614 = vlaneseq
    %v1615 = vshrl.u32 %v1614, 7
    %v1616 = vsub.s32 %v224, %v1615
    %v1617 = vrot.slane %v1591, %v1616
    %v1618 = vsel %vm229, %v1617, %v1613
    %v1619 = vlaneseq
    %v1620 = vshrl.u32 %v1619, 7
    %v1621 = vsub.s32 %v231, %v1620
    %v1622 = vrot.slane %v1592, %v1621
    %v1623 = vsel %vm236, %v1622, %v1618
    %v1624 = vlaneseq
    %v1625 = vshrl.u32 %v1624, 7
    %v1626 = vsub.s32 %v238, %v1625
    %v1627 = vrot.slane %v1593, %v1626
    %v1628 = vsel %vm243, %v1627, %v1623
    %v1629 = vlaneseq
    %v1630 = vshrl.u32 %v1629, 7
    %v1631 = vsub.s32 %v219, %v1630
    %v1632 = vrot.slane %v1594, %v1631
    %v1633 = vlaneseq
    %v1634 = vshrl.u32 %v1633, 7
    %v1635 = vsub.s32 %v224, %v1634
    %v1636 = vrot.slane %v1595, %v1635
    %v1637 = vsel %vm229, %v1636, %v1632
    %v1638 = vlaneseq
    %v1639 = vshrl.u32 %v1638, 7
    %v1640 = vsub.s32 %v231, %v1639
    %v1641 = vrot.slane %v1596, %v1640
    %v1642 = vsel %vm236, %v1641, %v1637
    %v1643 = vlaneseq
    %v1644 = vshrl.u32 %v1643, 7
    %v1645 = vsub.s32 %v238, %v1644
    %v1646 = vrot.slane %v1597, %v1645
    %v1647 = vsel %vm243, %v1646, %v1642
    %v1650 = vadd.f32 %v1600, %v1628
    %v1651 = vadd.f32 %v1601, %v1647
    %v1652 = vtanh.pop %v1650
    %v1653 = vtanh.pop %v1651
    %v1654 = vmul.f32 %v1460, 0.95122945
    %v1655 = vmul.f32 %v1461, 0.95122945
    %v1656 = vmul.f32 %v1548, 0.048770577
    %v1657 = vmul.f32 %v1549, 0.048770577
    %v1658 = vadd.f32 %v1654, %v1656
    %v1659 = vadd.f32 %v1655, %v1657
    %v1660 = vmul.f32 %v1466, 0.95122945
    %v1661 = vmul.f32 %v1467, 0.95122945
    %v1662 = vmul.f32 %v1652, 0.048770577
    %v1663 = vmul.f32 %v1653, 0.048770577
    %v1664 = vadd.f32 %v1660, %v1662
    %v1665 = vadd.f32 %v1661, %v1663
    %v1666 = vlaneseq
    %v1667 = vshrl.u32 %v1666, 7
    %v1668 = vsub.s32 0, %v1667
    %v1669 = vrot.slane %v1664, %v1668
    %s1671 = sor.u32 256, 32
    %1672 = vbcast.lane.b32.xlu0 %v1669, %s1671
    %v1673 = vpop.permute.xlu0 %1672
    %s1675 = sor.u32 256, 40
    %1676 = vbcast.lane.b32.xlu0 %v1669, %s1675
    %v1677 = vpop.permute.xlu0 %1676
    %s1679 = sor.u32 256, 48
    %1680 = vbcast.lane.b32.xlu0 %v1669, %s1679
    %v1681 = vpop.permute.xlu0 %1680
    %s1683 = sor.u32 256, 56
    %1684 = vbcast.lane.b32.xlu0 %v1669, %s1683
    %v1685 = vpop.permute.xlu0 %1684
    %v1686 = vlaneseq
    %v1687 = vshrl.u32 %v1686, 7
    %v1688 = vsub.s32 0, %v1687
    %v1689 = vrot.slane %v1665, %v1688
    %s1691 = sor.u32 256, 32
    %1692 = vbcast.lane.b32.xlu0 %v1689, %s1691
    %v1693 = vpop.permute.xlu0 %1692
    %s1695 = sor.u32 256, 40
    %1696 = vbcast.lane.b32.xlu0 %v1689, %s1695
    %v1697 = vpop.permute.xlu0 %1696
    %s1699 = sor.u32 256, 48
    %1700 = vbcast.lane.b32.xlu0 %v1689, %s1699
    %v1701 = vpop.permute.xlu0 %1700
    %s1703 = sor.u32 256, 56
    %1704 = vbcast.lane.b32.xlu0 %v1689, %s1703
    %v1705 = vpop.permute.xlu0 %1704
    %v1706 = vlaneseq
    %v1707 = vshrl.u32 %v1706, 7
    %v1708 = vsub.s32 0, %v1707
    %v1709 = vrot.slane %v1658, %v1708
    %v1710 = vlaneseq
    %v1711 = vshrl.u32 %v1710, 7
    %v1712 = vsub.s32 0, %v1711
    %v1713 = vrot.slane %v1659, %v1712
    %v1714 = vmul.f32 %v1673, %v1709
    %v1715 = vmul.f32 %v1677, %v1709
    %v1716 = vmul.f32 %v1681, %v1709
    %v1717 = vmul.f32 %v1685, %v1709
    %v1718 = vmul.f32 %v1693, %v1713
    %v1719 = vmul.f32 %v1697, %v1713
    %v1720 = vmul.f32 %v1701, %v1713
    %v1721 = vmul.f32 %v1705, %v1713
    %v1722 = vmul.f32 %v1714, 0.1
    %v1723 = vmul.f32 %v1715, 0.1
    %v1724 = vmul.f32 %v1716, 0.1
    %v1725 = vmul.f32 %v1717, 0.1
    %v1726 = vmul.f32 %v1718, 0.1
    %v1727 = vmul.f32 %v1719, 0.1
    %v1728 = vmul.f32 %v1720, 0.1
    %v1729 = vmul.f32 %v1721, 0.1
    %v1730 = vadd.f32 %v1532, %v1722
    %v1731 = vadd.f32 %v1533, %v1723
    %v1732 = vadd.f32 %v1534, %v1724
    %v1733 = vadd.f32 %v1535, %v1725
    %v1734 = vadd.f32 %v1536, %v1726
    %v1735 = vadd.f32 %v1537, %v1727
    %v1736 = vadd.f32 %v1538, %v1728
    %v1737 = vadd.f32 %v1539, %v1729
    %1738 = vst.msk [vmem:[#allocation8] sm:$0xff] %vm67, %v1730
    %1739 = vst.msk [vmem:[#allocation8 + $0x8] sm:$0xff] %vm67, %v1731
    %1740 = vst.msk [vmem:[#allocation8 + $0x10] sm:$0xff] %vm67, %v1732
    %1741 = vst.msk [vmem:[#allocation8 + $0x18] sm:$0xff] %vm67, %v1733
    %1742 = vst.msk [vmem:[#allocation8 + $0x20] sm:$0xff] %vm67, %v1734
    %1743 = vst.msk [vmem:[#allocation8 + $0x28] sm:$0xff] %vm67, %v1735
    %1744 = vst.msk [vmem:[#allocation8 + $0x30] sm:$0xff] %vm67, %v1736
    %1745 = vst.msk [vmem:[#allocation8 + $0x38] sm:$0xff] %vm67, %v1737
    %v1748 = vrot.slane %v160, 7
    %vm1749 = vcmask 1041409
    %v1750 = vsel %vm1749, %v1748, %v159
    %v1754 = vrot.slane %v361, 7
    %v1755 = vsel %vm1749, %v1754, %v360
    %1756 = vrot.lane.b32.xlu0 %v1755, 32
    %v1757 = vpop.permute.xlu0 %1756
    %v1761 = vrot.slane %v559, 7
    %v1762 = vsel %vm1749, %v1761, %v558
    %1763 = vrot.lane.b32.xlu0 %v1762, 64
    %v1764 = vpop.permute.xlu0 %1763
    %v1768 = vrot.slane %v757, 7
    %v1769 = vsel %vm1749, %v1768, %v756
    %1770 = vrot.lane.b32.xlu0 %v1769, 96
    %v1771 = vpop.permute.xlu0 %1770
    %v1775 = vrot.slane %v955, 7
    %v1776 = vsel %vm1749, %v1775, %v954
    %v1780 = vrot.slane %v1153, 7
    %v1781 = vsel %vm1749, %v1780, %v1152
    %1782 = vrot.lane.b32.xlu0 %v1781, 32
    %v1783 = vpop.permute.xlu0 %1782
    %v1787 = vrot.slane %v1351, 7
    %v1788 = vsel %vm1749, %v1787, %v1350
    %1789 = vrot.lane.b32.xlu0 %v1788, 64
    %v1790 = vpop.permute.xlu0 %1789
    %v1794 = vrot.slane %v1549, 7
    %v1795 = vsel %vm1749, %v1794, %v1548
    %1796 = vrot.lane.b32.xlu0 %v1795, 96
    %v1797 = vpop.permute.xlu0 %1796
    %v1799 = vsel %vm67, %v1750, %v1757
    %vm1800 = vcmask 523264
    %v1801 = vsel %vm1800, %v1799, %v1764
    %vm1802 = vcmask 785408
    %v1803 = vsel %vm1802, %v1801, %v1771
    %v1804 = vsel %vm67, %v1776, %v1783
    %v1805 = vsel %vm1800, %v1804, %v1790
    %v1806 = vsel %vm1802, %v1805, %v1797
    %v1809 = vcombine.low %v1803, %v1806
    %v1811 = vunpack.c.l.s4 1966171168
    %v1812 = vunpack.c.0.s8 %v1811
    %v1813 = vlaneseq
    %v1814 = vshrl.u32 %v1813, 7
    %v1815 = vsub.s32 %v1812, %v1814
    %v1816 = vrot.slane %v1809, %v1815
    %v1817 = vcombine.high %v1816, %v1816
    %v1819 = vunpack.c.l.s4 1966171168
    %v1820 = vunpack.c.0.s8 %v1819
    %v1821 = vlaneseq
    %v1822 = vshrl.u32 %v1821, 7
    %v1823 = vsub.s32 %v1820, %v1822
    %v1824 = vrot.slane %v1816, %v1823
    %v1826 = vunpack.c.l.s4 1966171168
    %v1827 = vunpack.c.0.s8 %v1826
    %v1828 = vlaneseq
    %v1829 = vshrl.u32 %v1828, 7
    %v1830 = vsub.s32 %v1827, %v1829
    %v1831 = vrot.slane %v1817, %v1830
    %v1834 = vlaneseq
    %vm1835 = vcmp.ge.s32.totalorder %v1834, 0
    %vm1836 = vcmp.lt.s32.totalorder %v1834, 256
    %vm1837 = vmand %vm1835, %vm1836
    %1838 = vst.msk [vmem:[%s4] sm:$0x3] %vm1837, %v1824
    %1839 = vst.msk [vmem:[%s4 + $0x2] sm:$0x3] %vm1837, %v1831
    %v1842 = vrot.slane %v269, 7
    %v1843 = vsel %vm1749, %v1842, %v268
    %1844 = vrot.lane.b32.xlu0 %v1843, 96
    %v1845 = vpop.permute.xlu0 %1844
    %v1849 = vrot.slane %v465, 7
    %v1850 = vsel %vm1749, %v1849, %v464
    %v1854 = vrot.slane %v663, 7
    %v1855 = vsel %vm1749, %v1854, %v662
    %1856 = vrot.lane.b32.xlu0 %v1855, 32
    %v1857 = vpop.permute.xlu0 %1856
    %v1861 = vrot.slane %v861, 7
    %v1862 = vsel %vm1749, %v1861, %v860
    %1863 = vrot.lane.b32.xlu0 %v1862, 64
    %v1864 = vpop.permute.xlu0 %1863
    %v1868 = vrot.slane %v1059, 7
    %v1869 = vsel %vm1749, %v1868, %v1058
    %1870 = vrot.lane.b32.xlu0 %v1869, 96
    %v1871 = vpop.permute.xlu0 %1870
    %v1875 = vrot.slane %v1257, 7
    %v1876 = vsel %vm1749, %v1875, %v1256
    %v1880 = vrot.slane %v1455, 7
    %v1881 = vsel %vm1749, %v1880, %v1454
    %1882 = vrot.lane.b32.xlu0 %v1881, 32
    %v1883 = vpop.permute.xlu0 %1882
    %v1887 = vrot.slane %v1653, 7
    %v1888 = vsel %vm1749, %v1887, %v1652
    %1889 = vrot.lane.b32.xlu0 %v1888, 64
    %v1890 = vpop.permute.xlu0 %1889
    %v1892 = vsel %vm67, %v1845, %v1850
    %v1893 = vsel %vm1800, %v1892, %v1857
    %v1894 = vsel %vm1802, %v1893, %v1864
    %v1895 = vsel %vm67, %v1871, %v1876
    %v1896 = vsel %vm1800, %v1895, %v1883
    %v1897 = vsel %vm1802, %v1896, %v1890
    %v1900 = vcombine.low %v1894, %v1897
    %v1902 = vunpack.c.l.s4 1966171168
    %v1903 = vunpack.c.0.s8 %v1902
    %v1904 = vlaneseq
    %v1905 = vshrl.u32 %v1904, 7
    %v1906 = vsub.s32 %v1903, %v1905
    %v1907 = vrot.slane %v1900, %v1906
    %v1908 = vcombine.high %v1907, %v1907
    %v1910 = vunpack.c.l.s4 1966171168
    %v1911 = vunpack.c.0.s8 %v1910
    %v1912 = vlaneseq
    %v1913 = vshrl.u32 %v1912, 7
    %v1914 = vsub.s32 %v1911, %v1913
    %v1915 = vrot.slane %v1907, %v1914
    %v1917 = vunpack.c.l.s4 1966171168
    %v1918 = vunpack.c.0.s8 %v1917
    %v1919 = vlaneseq
    %v1920 = vshrl.u32 %v1919, 7
    %v1921 = vsub.s32 %v1918, %v1920
    %v1922 = vrot.slane %v1908, %v1921
    %1925 = vst.msk [vmem:[%s5] sm:$0x3] %vm1837, %v1915
    %1926 = vst.msk [vmem:[%s5 + $0x2] sm:$0x3] %vm1837, %v1922
    %v1929 = vrot.slane %v1547, 7
    %v1930 = vsel %vm1749, %v1929, %v1546
    %v1934 = vrot.slane %v1651, 7
    %v1935 = vsel %vm1749, %v1934, %v1650
    %v1939 = vrot.slane %v1659, 7
    %v1940 = vsel %vm1749, %v1939, %v1658
    %1941 = vrot.lane.b32.xlu0 %v1940, 64
    %v1942 = vpop.permute.xlu0 %1941
    %v1946 = vrot.slane %v1665, 7
    %v1947 = vsel %vm1749, %v1946, %v1664
    %1948 = vrot.lane.b32.xlu0 %v1947, 64
    %v1949 = vpop.permute.xlu0 %1948
    %v1951 = vsel %vm67, %v1930, %v1935
    %v1952 = vsel %vm1800, %v1951, %v1942
    %v1953 = vsel %vm1802, %v1952, %v1949
    %v1956 = vunpack.c.l.s4 1966171168
    %v1957 = vunpack.c.0.s8 %v1956
    %v1958 = vlaneseq
    %v1959 = vshrl.u32 %v1958, 7
    %v1960 = vsub.s32 %v1957, %v1959
    %v1961 = vrot.slane %v1953, %v1960
    %v1962 = vcombine.high %v1961, %v1961
    %v1964 = vunpack.c.l.s4 1966171168
    %v1965 = vunpack.c.0.s8 %v1964
    %v1966 = vlaneseq
    %v1967 = vshrl.u32 %v1966, 7
    %v1968 = vsub.s32 %v1965, %v1967
    %v1969 = vrot.slane %v1961, %v1968
    %v1971 = vunpack.c.l.s4 1966171168
    %v1972 = vunpack.c.0.s8 %v1971
    %v1973 = vlaneseq
    %v1974 = vshrl.u32 %v1973, 7
    %v1975 = vsub.s32 %v1972, %v1974
    %v1976 = vrot.slane %v1962, %v1975
    %1979 = vst [vmem:[%s6] sm:$0x1] %v1969
    %1980 = vst [vmem:[%s6 + $0x1] sm:$0x1] %v1976
    %v1982 = vunpack.c.l.s4 1966171168
    %v1983 = vunpack.c.0.s8 %v1982
    %v1984 = vlaneseq
    %v1985 = vshrl.u32 %v1984, 7
    %v1986 = vsub.s32 %v1983, %v1985
    %v1987 = vrot.slane %v1897, %v1986
    %v1988 = vcombine.high %v1987, %v1987
    %v1990 = vunpack.c.l.s4 1966171168
    %v1991 = vunpack.c.0.s8 %v1990
    %v1992 = vlaneseq
    %v1993 = vshrl.u32 %v1992, 7
    %v1994 = vsub.s32 %v1991, %v1993
    %v1995 = vrot.slane %v1987, %v1994
    %v1997 = vunpack.c.l.s4 1966171168
    %v1998 = vunpack.c.0.s8 %v1997
    %v1999 = vlaneseq
    %v2000 = vshrl.u32 %v1999, 7
    %v2001 = vsub.s32 %v1998, %v2000
    %v2002 = vrot.slane %v1988, %v2001
    %2005 = vst [vmem:[%s7] sm:$0x1] %v1995
    %2006 = vst [vmem:[%s7 + $0x1] sm:$0x1] %v2002
    // Predicated region
    $region26: #{memory_layer_forward.1} parent=1 // pred_check
      _
    $region27: #{memory_layer_forward.1} parent=1 // pred_check_branch
      %2008 = sbr.rel (0) target = $region29
    $region28: #{memory_layer_forward.1} parent=1 // pred_region
      %s2010 = ssub.s32 1024, 1024
      %2011 = vsyncadd [#allocation4], %s2010
      %s2012 = sshll.u32 [#allocation8], 4
      %s2013 = int_to_ptr.vmem [resolvable:$true] %s2012
      %2018 = dma.vmem_to_hbm [thread:$0]  %s2013, 1024, %s3, [#allocation4], 128, 128, 8
    $region29: #{memory_layer_forward.1} parent=1 // pred_fallthru
      _
    // Predicated region
    $region30: #{memory_layer_forward.1} parent=1 // pred_check
      _
    $region31: #{memory_layer_forward.1} parent=1 // pred_check_branch
      %2020 = sbr.rel (0) target = $region33
    $region32: #{memory_layer_forward.1} parent=1 // pred_region
      _
    $region33: #{memory_layer_forward.1} parent=1 // pred_fallthru
      _
    // Predicated region
    $region34: #{memory_layer_forward.1} parent=1 // pred_check
      _
    $region35: #{memory_layer_forward.1} parent=1 // pred_check_branch
      %2022 = sbr.rel (0) target = $region37
    $region36: #{memory_layer_forward.1} parent=1 // pred_region
      _
    $region37: #{memory_layer_forward.1} parent=1 // pred_fallthru
      _
    // Predicated region
    $region38: #{memory_layer_forward.1} parent=1 // pred_check
      _
    $region39: #{memory_layer_forward.1} parent=1 // pred_check_branch
      %2024 = sbr.rel (0) target = $region41
    $region40: #{memory_layer_forward.1} parent=1 // pred_region
      _
    $region41: #{memory_layer_forward.1} parent=1 // pred_fallthru
      _
    // Predicated region
    $region42: #{memory_layer_forward.1} parent=1 // pred_check
      _
    $region43: #{memory_layer_forward.1} parent=1 // pred_check_branch
      %2026 = sbr.rel (0) target = $region45
    $region44: #{memory_layer_forward.1} parent=1 // pred_region
      _
    $region45: #{memory_layer_forward.1} parent=1 // pred_fallthru
      _
    // Predicated region
    $region46: #{memory_layer_forward.1} parent=1 // pred_check
      _
    $region47: #{memory_layer_forward.1} parent=1 // pred_check_branch
      %2028 = sbr.rel (0) target = $region49
    $region48: #{memory_layer_forward.1} parent=1 // pred_region
      %2029 = dma.done [#allocation4], 1024
    $region49: #{memory_layer_forward.1} parent=1 // pred_fallthru
      _
    // Predicated region
    $region50: #{memory_layer_forward.1} parent=1 // pred_check
      _
    $region51: #{memory_layer_forward.1} parent=1 // pred_check_branch
      %2031 = sbr.rel (0) target = $region53
    $region52: #{memory_layer_forward.1} parent=1 // pred_region
      _
    $region53: #{memory_layer_forward.1} parent=1 // pred_fallthru
      _
    // Predicated region
    $region54: #{memory_layer_forward.1} parent=1 // pred_check
      _
    $region55: #{memory_layer_forward.1} parent=1 // pred_check_branch
      %2033 = sbr.rel (0) target = $region57
    $region56: #{memory_layer_forward.1} parent=1 // pred_region
      _
    $region57: #{memory_layer_forward.1} parent=1 // pred_fallthru
      _
    // Predicated region
    $region58: #{memory_layer_forward.1} parent=1 // pred_check
      _
    $region59: #{memory_layer_forward.1} parent=1 // pred_check_branch
      %2035 = sbr.rel (0) target = $region61
    $region60: #{memory_layer_forward.1} parent=1 // pred_region
      _
    $region61: #{memory_layer_forward.1} parent=1 // pred_fallthru
      _
    // Predicated region
    $region62: #{memory_layer_forward.1} parent=1 // pred_check
      _
    $region63: #{memory_layer_forward.1} parent=1 // pred_check_branch
      %2037 = sbr.rel (0) target = $region65
    $region64: #{memory_layer_forward.1} parent=1 // pred_region
      _
    $region65: #{memory_layer_forward.1} parent=1 // pred_fallthru
      _
    %2038 = vsyncpa [#allocation3], 1
    %2039 = vsyncpa [#allocation6], 1
    %2040 = vsyncpa [#allocation4], 1

</llo_original>
